<compile_context>
chip_gen: v7x
topology: tpu7x:2x2x1
jax: 0.10.0
libtpu: 0.0.40
codegen_flags: <defaults>
</compile_context>

<pallas_src>
import functools

import jax
import jax.numpy as jnp
import numpy as np
from jax.experimental import pallas as pl
from jax.experimental.pallas import tpu as pltpu


def _ffm_kernel(x1_ref, x2_ref, masks_ref, w_ref, shift_ref,
                w1_ref, b1_ref, w2_ref, b2_ref, out_ref,
                xcat_ref, *, H, W):
    """One grid step = one batch element.

    x1_ref   : (1, C1, H*W)   input_1, NCHW with flattened spatial (bf16)
    x2_ref   : (1, C2, H*W)   input_2 (bf16)
    masks_ref: (9, H*W)       per-tap zero-padding masks (f32, 0/1)
    w_ref    : (9, Cout, Cin) per-tap conv weights, BN scale folded in (bf16)
    shift_ref: (Cout, 1)      folded BN shift (includes conv bias) (f32)
    w1_ref   : (Cout, Cout)   1x1 conv #1 weight, (out, in), 1/L folded in
    b1_ref   : (Cout, 1)
    w2_ref   : (Cout, Cout)   1x1 conv #2 weight, (out, in)
    b2_ref   : (Cout, 1)
    out_ref  : (1, Cout, H*W) lane-dense output block (f32)
    xcat_ref : (Cin, H*W)     VMEM scratch: channel-concatenated input (f32)
    """
    L = H * W
    C1 = x1_ref.shape[1]
    C2 = x2_ref.shape[1]
    Cin = C1 + C2
    del Cin  # (only real rows are written below; no padding rows exist)

    # ---- in-kernel channel concat (channels on sublanes), f32 math ---------
    xcat_ref[0:C1, :] = x1_ref[0].astype(jnp.float32)
    xcat_ref[C1:C1 + C2, :] = x2_ref[0].astype(jnp.float32)
    xcat = xcat_ref[...]                                   # (Cin, L) f32

    # ---- 3x3 conv: 9 lane-rolls + precomputed masks, accumulating MXU dots -
    # (no im2col slab is materialized; each tap feeds the MXU straight from
    #  vregs with bf16 operands and f32 accumulation)
    acc = None
    for dy in range(3):
        for dx in range(3):
            t = dy * 3 + dx
            offset = (dy - 1) * W + (dx - 1)               # flat source offset
            piece = xcat if offset == 0 else pltpu.roll(xcat, (-offset) % L,
                                                        axis=1)
            if t != 4:                                     # center tap: no pad
                m = masks_ref[t:t + 1, :] != 0.0           # (1, L) bool
                piece = jnp.where(m, piece, 0.0)
            term = jnp.dot(w_ref[t], piece.astype(jnp.bfloat16),
                           preferred_element_type=jnp.float32)   # (Cout, L)
            acc = term if acc is None else acc + term

    # ---- folded BatchNorm (scale already in weights) + ReLU -----------------
    feature = jnp.maximum(acc + shift_ref[...], 0.0)       # (Cout, L) f32

    # ---- global average pool: lane reduce (1/L folded into w1) --------------
    pooled = jnp.sum(feature, axis=1, keepdims=True)       # (Cout, 1)

    # ---- 1x1 -> ReLU -> 1x1 -> sigmoid attention, as MXU matvecs ------------
    z1 = jnp.maximum(
        jnp.dot(w1_ref[...], pooled, preferred_element_type=jnp.float32)
        + b1_ref[...], 0.0)
    z2 = (jnp.dot(w2_ref[...], z1, preferred_element_type=jnp.float32)
          + b2_ref[...])
    attn = jax.nn.sigmoid(z2) + 1.0      # feature*a + feature = feature*(a+1)

    out_ref[0] = feature * attn          # (Cout, L) lane-dense store


def feature_fusion_forward(input_1, input_2, params):
    """input_1, input_2: NCHW float32. Returns NCHW float32."""
    N, C1, H, W = input_1.shape
    C2 = input_2.shape[1]
    Cin = C1 + C2
    Cout = params["wconv"].shape[-1]
    L = H * W

    # Free metadata reshapes + bf16 cast (halves activation DMA).
    x1 = input_1.reshape(N, C1, L).astype(jnp.bfloat16)
    x2 = input_2.reshape(N, C2, L).astype(jnp.bfloat16)

    # Fold BatchNorm (eval mode): scale goes into the conv weights (in f32,
    # single bf16 cast afterwards); shift (with conv bias) stays separate.
    eps = 1e-5
    scale = params["gamma"] / jnp.sqrt(params["rvar"] + eps)          # (Cout,)
    shift = (params["bconv"] - params["rmean"]) * scale + params["beta"]
    shift = shift.reshape(Cout, 1).astype(jnp.float32)

    # 3x3 conv weight HWIO (3,3,Cin,Cout) -> per-tap (9, Cout, Cin), scaled.
    w_t = jnp.transpose(params["wconv"], (0, 1, 3, 2)).reshape(9, Cout, Cin)
    w_taps = (w_t * scale[None, :, None]).astype(jnp.bfloat16)

    # 1x1 conv weights stored (in, out) in params; kernel wants (out, in).
    # Fold the 1/L average-pool factor into w1.
    w1 = (jnp.transpose(params["w1"]) * (1.0 / L)).astype(jnp.float32)
    w2 = jnp.transpose(params["w2"]).astype(jnp.float32)
    b1 = params["b1"].reshape(Cout, 1).astype(jnp.float32)
    b2 = params["b2"].reshape(Cout, 1).astype(jnp.float32)

    # Precompute the 9 zero-padding masks once (constant across batch/grid).
    p = np.arange(L)
    row = p // W
    col = p % W
    masks_np = np.ones((9, L), np.float32)
    for dy in range(3):
        for dx in range(3):
            m = np.ones(L, np.bool_)
            if dy == 0:
                m &= row >= 1
            if dy == 2:
                m &= row <= H - 2
            if dx == 0:
                m &= col >= 1
            if dx == 2:
                m &= col <= W - 2
            masks_np[dy * 3 + dx] = m.astype(np.float32)
    masks = jnp.asarray(masks_np)

    kernel = functools.partial(_ffm_kernel, H=H, W=W)
    out_flat = pl.pallas_call(
        kernel,
        out_shape=jax.ShapeDtypeStruct((N, Cout, L), jnp.float32),
        grid=(N,),
        in_specs=[
            pl.BlockSpec((1, C1, L), lambda n: (n, 0, 0)),
            pl.BlockSpec((1, C2, L), lambda n: (n, 0, 0)),
            pl.BlockSpec((9, L), lambda n: (0, 0)),
            pl.BlockSpec((9, Cout, Cin), lambda n: (0, 0, 0)),
            pl.BlockSpec((Cout, 1), lambda n: (0, 0)),
            pl.BlockSpec((Cout, Cout), lambda n: (0, 0)),
            pl.BlockSpec((Cout, 1), lambda n: (0, 0)),
            pl.BlockSpec((Cout, Cout), lambda n: (0, 0)),
            pl.BlockSpec((Cout, 1), lambda n: (0, 0)),
        ],
        out_specs=pl.BlockSpec((1, Cout, L), lambda n: (n, 0, 0)),
        scratch_shapes=[
            pltpu.VMEM((Cin, L), jnp.float32),
        ],
        compiler_params=pltpu.CompilerParams(
            dimension_semantics=("parallel",),
            vmem_limit_bytes=32 * 1024 * 1024),
    )(x1, x2, masks, w_taps, shift, w1, b1, w2, b2)

    # Free metadata reshape back to NCHW; no transpose needed.
    return out_flat.reshape(N, Cout, H, W)


def reference_forward(input_1, input_2, params):
    """Pure-JAX reference (same math, XLA conv) for correctness checking."""
    x = jnp.concatenate([input_1, input_2], axis=1)
    x = jnp.transpose(x, (0, 2, 3, 1)).astype(jnp.float32)
    conv = jax.lax.conv_general_dilated(
        x, params["wconv"], window_strides=(1, 1),
        padding=((1, 1), (1, 1)),
        dimension_numbers=("NHWC", "HWIO", "NHWC"))
    eps = 1e-5
    scale = params["gamma"] / jnp.sqrt(params["rvar"] + eps)
    shift = (params["bconv"] - params["rmean"]) * scale + params["beta"]
    feature = jnp.maximum(conv * scale + shift, 0.0)
    pooled = jnp.mean(feature, axis=(1, 2), keepdims=True)
    z1 = jnp.maximum(
        jnp.einsum("nhwc,cd->nhwd", pooled, params["w1"]) + params["b1"], 0.0)
    z2 = jax.nn.sigmoid(
        jnp.einsum("nhwc,cd->nhwd", z1, params["w2"]) + params["b2"])
    out = feature * z2 + feature
    return jnp.transpose(out, (0, 3, 1, 2))


def init_params(key, in_channels, num_classes):
    ks = jax.random.split(key, 8)
    p = {
        # ConvBlock: conv3x3 (HWIO) + bias + BN params (eval mode).
        "wconv": 0.1 * jax.random.normal(ks[0], (3, 3, in_channels, num_classes),
                                         jnp.float32),
        "bconv": 0.1 * jax.random.normal(ks[1], (num_classes,), jnp.float32),
        "gamma": 1.0 + 0.1 * jax.random.normal(ks[2], (num_classes,), jnp.float32),
        "beta": 0.1 * jax.random.normal(ks[3], (num_classes,), jnp.float32),
        "rmean": 0.1 * jax.random.normal(ks[4], (num_classes,), jnp.float32),
        "rvar": jnp.abs(1.0 + 0.1 * jax.random.normal(ks[5], (num_classes,),
                                                      jnp.float32)),
        # 1x1 convs, stored as (Cin, Cout) matrices.
        "w1": 0.1 * jax.random.normal(ks[6], (num_classes, num_classes),
                                      jnp.float32),
        "w2": 0.1 * jax.random.normal(ks[7], (num_classes, num_classes),
                                      jnp.float32),
    }
    p["b1"] = jnp.zeros((num_classes,), jnp.float32) + 0.05
    p["b2"] = jnp.zeros((num_classes,), jnp.float32) - 0.05
    return p


if __name__ == "__main__":
    # Small shapes: batch=2, each input has 4 channels -> in_channels=8,
    # num_classes=4, spatial 16x16 (so H*W=256 is the lane-dense last dim).
    B, C_each, H, W = 2, 4, 16, 16
    in_channels = 2 * C_each
    num_classes = 4

    key = jax.random.PRNGKey(0)
    k1, k2, kp = jax.random.split(key, 3)
    input_1 = jax.random.normal(k1, (B, C_each, H, W), jnp.float32)   # NCHW
    input_2 = jax.random.normal(k2, (B, C_each, H, W), jnp.float32)   # NCHW
    params = init_params(kp, in_channels, num_classes)

    out = jax.block_until_ready(feature_fusion_forward(input_1, input_2, params))
    ref = jax.block_until_ready(reference_forward(input_1, input_2, params))

    assert out.shape == (B, num_classes, H, W), out.shape
    # Tolerance accounts for bf16 MXU operands / bf16 inputs (f32 accumulation).
    assert np.allclose(np.asarray(out), np.asarray(ref), rtol=2e-2, atol=2e-2), (
        "mismatch vs reference")

    print("KERNEL_OK")
</pallas_src>

<mosaic_0001>
module attributes {stable_mosaic.version = 11 : i64} {
  func.func @_ffm_kernel(%arg0: i32, %arg1: memref<1x4x256xbf16, #tpu.memory_space<vmem>>, %arg2: memref<1x4x256xbf16, #tpu.memory_space<vmem>>, %arg3: memref<9x256xf32, #tpu.memory_space<vmem>>, %arg4: memref<9x4x8xbf16, #tpu.memory_space<vmem>>, %arg5: memref<4x1xf32, #tpu.memory_space<vmem>>, %arg6: memref<4x4xf32, #tpu.memory_space<vmem>>, %arg7: memref<4x1xf32, #tpu.memory_space<vmem>>, %arg8: memref<4x4xf32, #tpu.memory_space<vmem>>, %arg9: memref<4x1xf32, #tpu.memory_space<vmem>>, %arg10: memref<1x4x256xf32, #tpu.memory_space<vmem>>, %arg11: memref<8x256xf32, #tpu.memory_space<vmem>>) attributes {dimension_semantics = [#tpu.dimension_semantics<parallel>], iteration_bounds = array<i64: 2>, scalar_prefetch = 0 : i64, scratch_operands = 1 : i64, tpu.core_type = #tpu.core_type<tc>, window_params = [{transform_indices = @transform_0, window_bounds = array<i64: 1, 4, 256>}, {transform_indices = @transform_1, window_bounds = array<i64: 1, 4, 256>}, {pipeline_mode = #tpu.pipeline_mode<synchronous>, transform_indices = @transform_2, window_bounds = array<i64: 9, 256>}, {pipeline_mode = #tpu.pipeline_mode<synchronous>, transform_indices = @transform_3, window_bounds = array<i64: 9, 4, 8>}, {pipeline_mode = #tpu.pipeline_mode<synchronous>, transform_indices = @transform_4, window_bounds = array<i64: 4, 1>}, {pipeline_mode = #tpu.pipeline_mode<synchronous>, transform_indices = @transform_5, window_bounds = array<i64: 4, 4>}, {pipeline_mode = #tpu.pipeline_mode<synchronous>, transform_indices = @transform_6, window_bounds = array<i64: 4, 1>}, {pipeline_mode = #tpu.pipeline_mode<synchronous>, transform_indices = @transform_7, window_bounds = array<i64: 4, 4>}, {pipeline_mode = #tpu.pipeline_mode<synchronous>, transform_indices = @transform_8, window_bounds = array<i64: 4, 1>}, {transform_indices = @transform_9, window_bounds = array<i64: 1, 4, 256>}]} {
    %c0 = arith.constant 0 : index
    %c0_0 = arith.constant 0 : index
    %c0_1 = arith.constant 0 : index
    %0 = vector.load %arg1[%c0, %c0_0, %c0_1] : memref<1x4x256xbf16, #tpu.memory_space<vmem>>, vector<1x4x256xbf16>
    %1 = vector.shape_cast %0 : vector<1x4x256xbf16> to vector<4x256xbf16>
    %2 = arith.extf %1 : vector<4x256xbf16> to vector<4x256xf32>
    %c0_2 = arith.constant 0 : index
    %c0_3 = arith.constant 0 : index
    %3 = vector.load %arg11[%c0_2, %c0_3] : memref<8x256xf32, #tpu.memory_space<vmem>>, vector<4x256xf32>
    tpu.vector_store %arg11[%c0_2, %c0_3], %2 {strides = array<i32>} : memref<8x256xf32, #tpu.memory_space<vmem>>, vector<4x256xf32>,
    %c0_4 = arith.constant 0 : index
    %c0_5 = arith.constant 0 : index
    %c0_6 = arith.constant 0 : index
    %4 = vector.load %arg2[%c0_4, %c0_5, %c0_6] : memref<1x4x256xbf16, #tpu.memory_space<vmem>>, vector<1x4x256xbf16>
    %5 = vector.shape_cast %4 : vector<1x4x256xbf16> to vector<4x256xbf16>
    %6 = arith.extf %5 : vector<4x256xbf16> to vector<4x256xf32>
    %c4 = arith.constant 4 : index
    %c0_7 = arith.constant 0 : index
    %7 = vector.load %arg11[%c4, %c0_7] : memref<8x256xf32, #tpu.memory_space<vmem>>, vector<4x256xf32>
    tpu.vector_store %arg11[%c4, %c0_7], %6 {strides = array<i32>} : memref<8x256xf32, #tpu.memory_space<vmem>>, vector<4x256xf32>,
    %c0_8 = arith.constant 0 : index
    %c0_9 = arith.constant 0 : index
    %8 = vector.load %arg11[%c0_8, %c0_9] : memref<8x256xf32, #tpu.memory_space<vmem>>, vector<8x256xf32>
    %c17_i32 = arith.constant 17 : i32
    %9 = tpu.dynamic_rotate %8 by %c17_i32 dim 1 : vector<8x256xf32>, i32 -> vector<8x256xf32>
    %c0_10 = arith.constant 0 : index
    %c0_11 = arith.constant 0 : index
    %10 = vector.load %arg3[%c0_10, %c0_11] : memref<9x256xf32, #tpu.memory_space<vmem>>, vector<1x256xf32>
    %cst = arith.constant 0.000000e+00 : f32
    %11 = vector.broadcast %cst : f32 to vector<1x256xf32>
    %12 = arith.cmpf one, %10, %11 : vector<1x256xf32>
    %cst_12 = arith.constant 0.000000e+00 : f32
    %13 = vector.shape_cast %12 : vector<1x256xi1> to vector<1x256xi1>
    %14 = vector.broadcast %13 : vector<1x256xi1> to vector<8x256xi1>
    %15 = vector.broadcast %cst_12 : f32 to vector<8x256xf32>
    %16 = arith.select %14, %9, %15 : vector<8x256xi1>, vector<8x256xf32>
    %c0_13 = arith.constant 0 : index
    %c0_14 = arith.constant 0 : index
    %c0_15 = arith.constant 0 : index
    %17 = vector.load %arg4[%c0_13, %c0_14, %c0_15] : memref<9x4x8xbf16, #tpu.memory_space<vmem>>, vector<1x4x8xbf16>
    %18 = vector.shape_cast %17 : vector<1x4x8xbf16> to vector<4x8xbf16>
    %19 = arith.truncf %16 : vector<8x256xf32> to vector<8x256xbf16>
    %cst_16 = arith.constant dense<0.000000e+00> : vector<4x256xf32>
    %20 = tpu.matmul %18, %19, %cst_16 {dimension_numbers = #tpu.dot_dimension_numbers<[1], [0], [0], [1], [0, 0, 1, 1], [], []>} : vector<4x8xbf16>, vector<8x256xbf16>, vector<4x256xf32> -> vector<4x256xf32>
    %c16_i32 = arith.constant 16 : i32
    %21 = tpu.dynamic_rotate %8 by %c16_i32 dim 1 : vector<8x256xf32>, i32 -> vector<8x256xf32>
    %c1 = arith.constant 1 : index
    %c0_17 = arith.constant 0 : index
    %22 = vector.load %arg3[%c1, %c0_17] : memref<9x256xf32, #tpu.memory_space<vmem>>, vector<1x256xf32>
    %cst_18 = arith.constant 0.000000e+00 : f32
    %23 = vector.broadcast %cst_18 : f32 to vector<1x256xf32>
    %24 = arith.cmpf one, %22, %23 : vector<1x256xf32>
    %cst_19 = arith.constant 0.000000e+00 : f32
    %25 = vector.shape_cast %24 : vector<1x256xi1> to vector<1x256xi1>
    %26 = vector.broadcast %25 : vector<1x256xi1> to vector<8x256xi1>
    %27 = vector.broadcast %cst_19 : f32 to vector<8x256xf32>
    %28 = arith.select %26, %21, %27 : vector<8x256xi1>, vector<8x256xf32>
    %c1_20 = arith.constant 1 : index
    %c0_21 = arith.constant 0 : index
    %c0_22 = arith.constant 0 : index
    %29 = vector.load %arg4[%c1_20, %c0_21, %c0_22] : memref<9x4x8xbf16, #tpu.memory_space<vmem>>, vector<1x4x8xbf16>
    %30 = vector.shape_cast %29 : vector<1x4x8xbf16> to vector<4x8xbf16>
    %31 = arith.truncf %28 : vector<8x256xf32> to vector<8x256xbf16>
    %cst_23 = arith.constant dense<0.000000e+00> : vector<4x256xf32>
    %32 = tpu.matmul %30, %31, %cst_23 {dimension_numbers = #tpu.dot_dimension_numbers<[1], [0], [0], [1], [0, 0, 1, 1], [], []>} : vector<4x8xbf16>, vector<8x256xbf16>, vector<4x256xf32> -> vector<4x256xf32>
    %33 = arith.addf %20, %32 : vector<4x256xf32>
    %c15_i32 = arith.constant 15 : i32
    %34 = tpu.dynamic_rotate %8 by %c15_i32 dim 1 : vector<8x256xf32>, i32 -> vector<8x256xf32>
    %c2 = arith.constant 2 : index
    %c0_24 = arith.constant 0 : index
    %35 = vector.load %arg3[%c2, %c0_24] : memref<9x256xf32, #tpu.memory_space<vmem>>, vector<1x256xf32>
    %cst_25 = arith.constant 0.000000e+00 : f32
    %36 = vector.broadcast %cst_25 : f32 to vector<1x256xf32>
    %37 = arith.cmpf one, %35, %36 : vector<1x256xf32>
    %cst_26 = arith.constant 0.000000e+00 : f32
    %38 = vector.shape_cast %37 : vector<1x256xi1> to vector<1x256xi1>
    %39 = vector.broadcast %38 : vector<1x256xi1> to vector<8x256xi1>
    %40 = vector.broadcast %cst_26 : f32 to vector<8x256xf32>
    %41 = arith.select %39, %34, %40 : vector<8x256xi1>, vector<8x256xf32>
    %c2_27 = arith.constant 2 : index
    %c0_28 = arith.constant 0 : index
    %c0_29 = arith.constant 0 : index
    %42 = vector.load %arg4[%c2_27, %c0_28, %c0_29] : memref<9x4x8xbf16, #tpu.memory_space<vmem>>, vector<1x4x8xbf16>
    %43 = vector.shape_cast %42 : vector<1x4x8xbf16> to vector<4x8xbf16>
    %44 = arith.truncf %41 : vector<8x256xf32> to vector<8x256xbf16>
    %cst_30 = arith.constant dense<0.000000e+00> : vector<4x256xf32>
    %45 = tpu.matmul %43, %44, %cst_30 {dimension_numbers = #tpu.dot_dimension_numbers<[1], [0], [0], [1], [0, 0, 1, 1], [], []>} : vector<4x8xbf16>, vector<8x256xbf16>, vector<4x256xf32> -> vector<4x256xf32>
    %46 = arith.addf %33, %45 : vector<4x256xf32>
    %c1_i32 = arith.constant 1 : i32
    %47 = tpu.dynamic_rotate %8 by %c1_i32 dim 1 : vector<8x256xf32>, i32 -> vector<8x256xf32>
    %c3 = arith.constant 3 : index
    %c0_31 = arith.constant 0 : index
    %48 = vector.load %arg3[%c3, %c0_31] : memref<9x256xf32, #tpu.memory_space<vmem>>, vector<1x256xf32>
    %cst_32 = arith.constant 0.000000e+00 : f32
    %49 = vector.broadcast %cst_32 : f32 to vector<1x256xf32>
    %50 = arith.cmpf one, %48, %49 : vector<1x256xf32>
    %cst_33 = arith.constant 0.000000e+00 : f32
    %51 = vector.shape_cast %50 : vector<1x256xi1> to vector<1x256xi1>
    %52 = vector.broadcast %51 : vector<1x256xi1> to vector<8x256xi1>
    %53 = vector.broadcast %cst_33 : f32 to vector<8x256xf32>
    %54 = arith.select %52, %47, %53 : vector<8x256xi1>, vector<8x256xf32>
    %c3_34 = arith.constant 3 : index
    %c0_35 = arith.constant 0 : index
    %c0_36 = arith.constant 0 : index
    %55 = vector.load %arg4[%c3_34, %c0_35, %c0_36] : memref<9x4x8xbf16, #tpu.memory_space<vmem>>, vector<1x4x8xbf16>
    %56 = vector.shape_cast %55 : vector<1x4x8xbf16> to vector<4x8xbf16>
    %57 = arith.truncf %54 : vector<8x256xf32> to vector<8x256xbf16>
    %cst_37 = arith.constant dense<0.000000e+00> : vector<4x256xf32>
    %58 = tpu.matmul %56, %57, %cst_37 {dimension_numbers = #tpu.dot_dimension_numbers<[1], [0], [0], [1], [0, 0, 1, 1], [], []>} : vector<4x8xbf16>, vector<8x256xbf16>, vector<4x256xf32> -> vector<4x256xf32>
    %59 = arith.addf %46, %58 : vector<4x256xf32>
    %c4_38 = arith.constant 4 : index
    %c0_39 = arith.constant 0 : index
    %c0_40 = arith.constant 0 : index
    %60 = vector.load %arg4[%c4_38, %c0_39, %c0_40] : memref<9x4x8xbf16, #tpu.memory_space<vmem>>, vector<1x4x8xbf16>
    %61 = vector.shape_cast %60 : vector<1x4x8xbf16> to vector<4x8xbf16>
    %62 = arith.truncf %8 : vector<8x256xf32> to vector<8x256xbf16>
    %cst_41 = arith.constant dense<0.000000e+00> : vector<4x256xf32>
    %63 = tpu.matmul %61, %62, %cst_41 {dimension_numbers = #tpu.dot_dimension_numbers<[1], [0], [0], [1], [0, 0, 1, 1], [], []>} : vector<4x8xbf16>, vector<8x256xbf16>, vector<4x256xf32> -> vector<4x256xf32>
    %64 = arith.addf %59, %63 : vector<4x256xf32>
    %c255_i32 = arith.constant 255 : i32
    %65 = tpu.dynamic_rotate %8 by %c255_i32 dim 1 : vector<8x256xf32>, i32 -> vector<8x256xf32>
    %c5 = arith.constant 5 : index
    %c0_42 = arith.constant 0 : index
    %66 = vector.load %arg3[%c5, %c0_42] : memref<9x256xf32, #tpu.memory_space<vmem>>, vector<1x256xf32>
    %cst_43 = arith.constant 0.000000e+00 : f32
    %67 = vector.broadcast %cst_43 : f32 to vector<1x256xf32>
    %68 = arith.cmpf one, %66, %67 : vector<1x256xf32>
    %cst_44 = arith.constant 0.000000e+00 : f32
    %69 = vector.shape_cast %68 : vector<1x256xi1> to vector<1x256xi1>
    %70 = vector.broadcast %69 : vector<1x256xi1> to vector<8x256xi1>
    %71 = vector.broadcast %cst_44 : f32 to vector<8x256xf32>
    %72 = arith.select %70, %65, %71 : vector<8x256xi1>, vector<8x256xf32>
    %c5_45 = arith.constant 5 : index
    %c0_46 = arith.constant 0 : index
    %c0_47 = arith.constant 0 : index
    %73 = vector.load %arg4[%c5_45, %c0_46, %c0_47] : memref<9x4x8xbf16, #tpu.memory_space<vmem>>, vector<1x4x8xbf16>
    %74 = vector.shape_cast %73 : vector<1x4x8xbf16> to vector<4x8xbf16>
    %75 = arith.truncf %72 : vector<8x256xf32> to vector<8x256xbf16>
    %cst_48 = arith.constant dense<0.000000e+00> : vector<4x256xf32>
    %76 = tpu.matmul %74, %75, %cst_48 {dimension_numbers = #tpu.dot_dimension_numbers<[1], [0], [0], [1], [0, 0, 1, 1], [], []>} : vector<4x8xbf16>, vector<8x256xbf16>, vector<4x256xf32> -> vector<4x256xf32>
    %77 = arith.addf %64, %76 : vector<4x256xf32>
    %c241_i32 = arith.constant 241 : i32
    %78 = tpu.dynamic_rotate %8 by %c241_i32 dim 1 : vector<8x256xf32>, i32 -> vector<8x256xf32>
    %c6 = arith.constant 6 : index
    %c0_49 = arith.constant 0 : index
    %79 = vector.load %arg3[%c6, %c0_49] : memref<9x256xf32, #tpu.memory_space<vmem>>, vector<1x256xf32>
    %cst_50 = arith.constant 0.000000e+00 : f32
    %80 = vector.broadcast %cst_50 : f32 to vector<1x256xf32>
    %81 = arith.cmpf one, %79, %80 : vector<1x256xf32>
    %cst_51 = arith.constant 0.000000e+00 : f32
    %82 = vector.shape_cast %81 : vector<1x256xi1> to vector<1x256xi1>
    %83 = vector.broadcast %82 : vector<1x256xi1> to vector<8x256xi1>
    %84 = vector.broadcast %cst_51 : f32 to vector<8x256xf32>
    %85 = arith.select %83, %78, %84 : vector<8x256xi1>, vector<8x256xf32>
    %c6_52 = arith.constant 6 : index
    %c0_53 = arith.constant 0 : index
    %c0_54 = arith.constant 0 : index
    %86 = vector.load %arg4[%c6_52, %c0_53, %c0_54] : memref<9x4x8xbf16, #tpu.memory_space<vmem>>, vector<1x4x8xbf16>
    %87 = vector.shape_cast %86 : vector<1x4x8xbf16> to vector<4x8xbf16>
    %88 = arith.truncf %85 : vector<8x256xf32> to vector<8x256xbf16>
    %cst_55 = arith.constant dense<0.000000e+00> : vector<4x256xf32>
    %89 = tpu.matmul %87, %88, %cst_55 {dimension_numbers = #tpu.dot_dimension_numbers<[1], [0], [0], [1], [0, 0, 1, 1], [], []>} : vector<4x8xbf16>, vector<8x256xbf16>, vector<4x256xf32> -> vector<4x256xf32>
    %90 = arith.addf %77, %89 : vector<4x256xf32>
    %c240_i32 = arith.constant 240 : i32
    %91 = tpu.dynamic_rotate %8 by %c240_i32 dim 1 : vector<8x256xf32>, i32 -> vector<8x256xf32>
    %c7 = arith.constant 7 : index
    %c0_56 = arith.constant 0 : index
    %92 = vector.load %arg3[%c7, %c0_56] : memref<9x256xf32, #tpu.memory_space<vmem>>, vector<1x256xf32>
    %cst_57 = arith.constant 0.000000e+00 : f32
    %93 = vector.broadcast %cst_57 : f32 to vector<1x256xf32>
    %94 = arith.cmpf one, %92, %93 : vector<1x256xf32>
    %cst_58 = arith.constant 0.000000e+00 : f32
    %95 = vector.shape_cast %94 : vector<1x256xi1> to vector<1x256xi1>
    %96 = vector.broadcast %95 : vector<1x256xi1> to vector<8x256xi1>
    %97 = vector.broadcast %cst_58 : f32 to vector<8x256xf32>
    %98 = arith.select %96, %91, %97 : vector<8x256xi1>, vector<8x256xf32>
    %c7_59 = arith.constant 7 : index
    %c0_60 = arith.constant 0 : index
    %c0_61 = arith.constant 0 : index
    %99 = vector.load %arg4[%c7_59, %c0_60, %c0_61] : memref<9x4x8xbf16, #tpu.memory_space<vmem>>, vector<1x4x8xbf16>
    %100 = vector.shape_cast %99 : vector<1x4x8xbf16> to vector<4x8xbf16>
    %101 = arith.truncf %98 : vector<8x256xf32> to vector<8x256xbf16>
    %cst_62 = arith.constant dense<0.000000e+00> : vector<4x256xf32>
    %102 = tpu.matmul %100, %101, %cst_62 {dimension_numbers = #tpu.dot_dimension_numbers<[1], [0], [0], [1], [0, 0, 1, 1], [], []>} : vector<4x8xbf16>, vector<8x256xbf16>, vector<4x256xf32> -> vector<4x256xf32>
    %103 = arith.addf %90, %102 : vector<4x256xf32>
    %c239_i32 = arith.constant 239 : i32
    %104 = tpu.dynamic_rotate %8 by %c239_i32 dim 1 : vector<8x256xf32>, i32 -> vector<8x256xf32>
    %c8 = arith.constant 8 : index
    %c0_63 = arith.constant 0 : index
    %105 = vector.load %arg3[%c8, %c0_63] : memref<9x256xf32, #tpu.memory_space<vmem>>, vector<1x256xf32>
    %cst_64 = arith.constant 0.000000e+00 : f32
    %106 = vector.broadcast %cst_64 : f32 to vector<1x256xf32>
    %107 = arith.cmpf one, %105, %106 : vector<1x256xf32>
    %cst_65 = arith.constant 0.000000e+00 : f32
    %108 = vector.shape_cast %107 : vector<1x256xi1> to vector<1x256xi1>
    %109 = vector.broadcast %108 : vector<1x256xi1> to vector<8x256xi1>
    %110 = vector.broadcast %cst_65 : f32 to vector<8x256xf32>
    %111 = arith.select %109, %104, %110 : vector<8x256xi1>, vector<8x256xf32>
    %c8_66 = arith.constant 8 : index
    %c0_67 = arith.constant 0 : index
    %c0_68 = arith.constant 0 : index
    %112 = vector.load %arg4[%c8_66, %c0_67, %c0_68] : memref<9x4x8xbf16, #tpu.memory_space<vmem>>, vector<1x4x8xbf16>
    %113 = vector.shape_cast %112 : vector<1x4x8xbf16> to vector<4x8xbf16>
    %114 = arith.truncf %111 : vector<8x256xf32> to vector<8x256xbf16>
    %cst_69 = arith.constant dense<0.000000e+00> : vector<4x256xf32>
    %115 = tpu.matmul %113, %114, %cst_69 {dimension_numbers = #tpu.dot_dimension_numbers<[1], [0], [0], [1], [0, 0, 1, 1], [], []>} : vector<4x8xbf16>, vector<8x256xbf16>, vector<4x256xf32> -> vector<4x256xf32>
    %116 = arith.addf %103, %115 : vector<4x256xf32>
    %c0_70 = arith.constant 0 : index
    %c0_71 = arith.constant 0 : index
    %117 = vector.load %arg5[%c0_70, %c0_71] : memref<4x1xf32, #tpu.memory_space<vmem>>, vector<4x1xf32>
    %118 = vector.broadcast %117 : vector<4x1xf32> to vector<4x256xf32>
    %119 = arith.addf %116, %118 : vector<4x256xf32>
    %cst_72 = arith.constant 0.000000e+00 : f32
    %120 = vector.broadcast %cst_72 : f32 to vector<4x256xf32>
    %121 = arith.maximumf %119, %120 : vector<4x256xf32>
    %cst_73 = arith.constant dense<0.000000e+00> : vector<4xf32>
    %122 = vector.multi_reduction <add>, %121, %cst_73 [1] : vector<4x256xf32> to vector<4xf32>
    %123 = vector.shape_cast %122 : vector<4xf32> to vector<4x1xf32>
    %c0_74 = arith.constant 0 : index
    %c0_75 = arith.constant 0 : index
    %124 = vector.load %arg6[%c0_74, %c0_75] : memref<4x4xf32, #tpu.memory_space<vmem>>, vector<4x4xf32>
    %cst_76 = arith.constant dense<0.000000e+00> : vector<4x1xf32>
    %125 = tpu.matmul %124, %123, %cst_76 {dimension_numbers = #tpu.dot_dimension_numbers<[1], [0], [0], [1], [0, 0, 1, 1], [], []>} : vector<4x4xf32>, vector<4x1xf32>, vector<4x1xf32> -> vector<4x1xf32>
    %c0_77 = arith.constant 0 : index
    %c0_78 = arith.constant 0 : index
    %126 = vector.load %arg7[%c0_77, %c0_78] : memref<4x1xf32, #tpu.memory_space<vmem>>, vector<4x1xf32>
    %127 = arith.addf %125, %126 : vector<4x1xf32>
    %cst_79 = arith.constant 0.000000e+00 : f32
    %128 = vector.broadcast %cst_79 : f32 to vector<4x1xf32>
    %129 = arith.maximumf %127, %128 : vector<4x1xf32>
    %c0_80 = arith.constant 0 : index
    %c0_81 = arith.constant 0 : index
    %130 = vector.load %arg8[%c0_80, %c0_81] : memref<4x4xf32, #tpu.memory_space<vmem>>, vector<4x4xf32>
    %cst_82 = arith.constant dense<0.000000e+00> : vector<4x1xf32>
    %131 = tpu.matmul %130, %129, %cst_82 {dimension_numbers = #tpu.dot_dimension_numbers<[1], [0], [0], [1], [0, 0, 1, 1], [], []>} : vector<4x4xf32>, vector<4x1xf32>, vector<4x1xf32> -> vector<4x1xf32>
    %c0_83 = arith.constant 0 : index
    %c0_84 = arith.constant 0 : index
    %132 = vector.load %arg9[%c0_83, %c0_84] : memref<4x1xf32, #tpu.memory_space<vmem>>, vector<4x1xf32>
    %133 = arith.addf %131, %132 : vector<4x1xf32>
    %134 = arith.negf %133 : vector<4x1xf32>
    %135 = math.exp %134 : vector<4x1xf32>
    %cst_85 = arith.constant 1.000000e+00 : f32
    %136 = vector.broadcast %cst_85 : f32 to vector<4x1xf32>
    %137 = arith.addf %136, %135 : vector<4x1xf32>
    %138 = arith.divf %136, %137 : vector<4x1xf32>
    %cst_86 = arith.constant 1.000000e+00 : f32
    %139 = vector.broadcast %cst_86 : f32 to vector<4x1xf32>
    %140 = arith.addf %138, %139 : vector<4x1xf32>
    %141 = vector.broadcast %140 : vector<4x1xf32> to vector<4x256xf32>
    %142 = arith.mulf %121, %141 : vector<4x256xf32>
    %c0_87 = arith.constant 0 : index
    %c0_88 = arith.constant 0 : index
    %c0_89 = arith.constant 0 : index
    %143 = vector.load %arg10[%c0_87, %c0_88, %c0_89] : memref<1x4x256xf32, #tpu.memory_space<vmem>>, vector<1x4x256xf32>
    %144 = vector.shape_cast %143 : vector<1x4x256xf32> to vector<4x256xf32>
    %145 = vector.shape_cast %142 : vector<4x256xf32> to vector<1x4x256xf32>
    tpu.vector_store %arg10[%c0_87, %c0_88, %c0_89], %145 {strides = array<i32>} : memref<1x4x256xf32, #tpu.memory_space<vmem>>, vector<1x4x256xf32>,
    return
  }
  func.func @transform_0(%arg0: i32) -> (i32, i32, i32) {
    %c0_i32 = arith.constant 0 : i32
    %c0_i32_0 = arith.constant 0 : i32
    %c0_i32_1 = arith.constant 0 : i32
    return %arg0, %c0_i32, %c0_i32_0 : i32, i32, i32
  }
  func.func @transform_1(%arg0: i32) -> (i32, i32, i32) {
    %c0_i32 = arith.constant 0 : i32
    %c0_i32_0 = arith.constant 0 : i32
    %c0_i32_1 = arith.constant 0 : i32
    return %arg0, %c0_i32, %c0_i32_0 : i32, i32, i32
  }
  func.func @transform_2(%arg0: i32) -> (i32, i32) {
    %c0_i32 = arith.constant 0 : i32
    %c0_i32_0 = arith.constant 0 : i32
    %c0_i32_1 = arith.constant 0 : i32
    return %c0_i32, %c0_i32_0 : i32, i32
  }
  func.func @transform_3(%arg0: i32) -> (i32, i32, i32) {
    %c0_i32 = arith.constant 0 : i32
    %c0_i32_0 = arith.constant 0 : i32
    %c0_i32_1 = arith.constant 0 : i32
    %c0_i32_2 = arith.constant 0 : i32
    return %c0_i32, %c0_i32_0, %c0_i32_1 : i32, i32, i32
  }
  func.func @transform_4(%arg0: i32) -> (i32, i32) {
    %c0_i32 = arith.constant 0 : i32
    %c0_i32_0 = arith.constant 0 : i32
    %c0_i32_1 = arith.constant 0 : i32
    return %c0_i32, %c0_i32_0 : i32, i32
  }
  func.func @transform_5(%arg0: i32) -> (i32, i32) {
    %c0_i32 = arith.constant 0 : i32
    %c0_i32_0 = arith.constant 0 : i32
    %c0_i32_1 = arith.constant 0 : i32
    return %c0_i32, %c0_i32_0 : i32, i32
  }
  func.func @transform_6(%arg0: i32) -> (i32, i32) {
    %c0_i32 = arith.constant 0 : i32
    %c0_i32_0 = arith.constant 0 : i32
    %c0_i32_1 = arith.constant 0 : i32
    return %c0_i32, %c0_i32_0 : i32, i32
  }
  func.func @transform_7(%arg0: i32) -> (i32, i32) {
    %c0_i32 = arith.constant 0 : i32
    %c0_i32_0 = arith.constant 0 : i32
    %c0_i32_1 = arith.constant 0 : i32
    return %c0_i32, %c0_i32_0 : i32, i32
  }
  func.func @transform_8(%arg0: i32) -> (i32, i32) {
    %c0_i32 = arith.constant 0 : i32
    %c0_i32_0 = arith.constant 0 : i32
    %c0_i32_1 = arith.constant 0 : i32
    return %c0_i32, %c0_i32_0 : i32, i32
  }
  func.func @transform_9(%arg0: i32) -> (i32, i32, i32) {
    %c0_i32 = arith.constant 0 : i32
    %c0_i32_0 = arith.constant 0 : i32
    %c0_i32_1 = arith.constant 0 : i32
    return %arg0, %c0_i32, %c0_i32_0 : i32, i32, i32
  }
}

</mosaic_0001>

<llo_original>
// kernel: tpu_custom_call.1
$region0: #{tpu_custom_call.1}
  #allocation0 [shape = 'u32[]', space=smem, size = 0x4, offset = 0x4, fixed_abs, tag = 'smem constant byte address 0x4 - core index']
  #allocation1 [shape = 'u32[144,128]{1,0:T(1,128)}', space=vmem, size = 0x12000, scoped, tag = 'internal scratch']
  #allocation2 [shape = 'f32[8,256]{1,0:T(8,128)}', space=vmem, size = 0x2000, scoped, tag = 'scratch operand']
  %s0 = inlined_call_operand.vmem [shape: bf16[2,4,256], index: 0, kind: input, shape index: {}]
  %s1 = inlined_call_operand.hbm [shape: bf16[2,4,256], index: 1, kind: input, shape index: {}]
  %s2 = inlined_call_operand.vmem [shape: f32[9,256], index: 2, kind: input, shape index: {}]
  %s3 = inlined_call_operand.vmem [shape: bf16[9,4,8], index: 3, kind: input, shape index: {}]
  %s4 = inlined_call_operand.vmem [shape: f32[4,1], index: 4, kind: input, shape index: {}]
  %s5 = inlined_call_operand.vmem [shape: f32[4,4], index: 5, kind: input, shape index: {}]
  %s6 = inlined_call_operand.vmem [shape: f32[4,1], index: 6, kind: input, shape index: {}]
  %s7 = inlined_call_operand.vmem [shape: f32[4,4], index: 7, kind: input, shape index: {}]
  %s8 = inlined_call_operand.vmem [shape: f32[4,1], index: 8, kind: input, shape index: {}]
  %s9 = inlined_call_operand.hbm [shape: f32[2,4,256], index: 9, kind: output, shape index: {}]
  %s10 = sld [smem:[#allocation0]]
  $region73: #{tpu_custom_call.1} parent=0
    _
  %s12 = ssub.s32 1, %s10
  %s13 = scalar_select 0, %s12, %s10
  $region1: #{tpu_custom_call.1} parent=0
    #allocation3 [shape = 'u8[4096]{0}', space=vmem, size = 0x1000, scoped, tag = 'input window, operand 1']
    #allocation4 [shape = 's32[2]{0}', space=sflag, size = 0x8, scoped, tag = 'scoped memory for tpu_custom_call.1']
    #allocation5 [shape = 's32[2]{0}', space=sflag, size = 0x8, scoped, tag = 'scoped memory for tpu_custom_call.1']
    #allocation6 [shape = 'u8[8192]{0}', space=vmem, size = 0x2000, scoped, tag = 'output window, operand 0']
    %14 = vsyncpa [#allocation4], 0
    %s15 = scalar_lea.sflag [#allocation4], 1
    %16 = vsyncpa %s15, 0
    %17 = vsyncpa [#allocation5], 0
    %s18 = scalar_lea.sflag [#allocation5], 1
    %19 = vsyncpa %s18, 0
    loop: start=0, step=1, limit=4
    $region2: #{tpu_custom_call.1} parent=1 // loop_pre_header
      _
    $region3: #{tpu_custom_call.1} parent=1 // loop_header
      %s21 = sphi 0, %s25
      %p22 = scmp.ge.s32.totalorder %s21, 4
      %s31 = sphi 0, %s33
      %s34 = sphi 0, %s31
      %s35 = sphi 0, %s34
      %s51 = sphi 0, %s35
      %s57 = sphi 0, %s59
      %s60 = sphi 0, %s57
      %s61 = sphi 0, %s60
      %s77 = sphi 0, %s61
      %s81 = sphi 0, %s81
      %s83 = sphi 0, %s81
      %s84 = sphi 0, %s83
      %s98 = sphi 0, %s84
      %s102 = sphi 0, %s102
      %s104 = sphi 0, %s102
      %s105 = sphi 0, %s104
      %s119 = sphi 0, %s105
      %s123 = sphi 0, %s123
      %s125 = sphi 0, %s123
      %s126 = sphi 0, %s125
      %s140 = sphi 0, %s126
      %s144 = sphi 0, %s144
      %s146 = sphi 0, %s144
      %s147 = sphi 0, %s146
      %s161 = sphi 0, %s147
      %s165 = sphi 0, %s165
      %s167 = sphi 0, %s165
      %s168 = sphi 0, %s167
      %s182 = sphi 0, %s168
      %s186 = sphi 0, %s186
      %s188 = sphi 0, %s186
      %s189 = sphi 0, %s188
      %s203 = sphi 0, %s189
      %s207 = sphi 0, %s207
      %s209 = sphi 0, %s207
      %s210 = sphi 0, %s209
      %s224 = sphi 0, %s210
      %s230 = sphi 0, %s232
      %s233 = sphi 0, %s230
      %s234 = sphi 0, %s233
      %s250 = sphi 0, %s234
    $region4: #{tpu_custom_call.1} parent=1 // loop_header_branch
      %24 = sbr.rel (%p22) target = $region8
    $region5: #{tpu_custom_call.1} parent=1 // loop_body
      %s26 = ssub.s32 %s21, 1
      %s27 = ssub.s32 %s21, 2
      %s28 = sadd.s32 %s21, 1
      %s29 = ssub.s32 %s21, %s28
      %p30 = scmp.eq.s32.totalorder %s29, 0
      %s32 = sadd.s32 %s31, 1
      %s33 = scalar_select %p30, %s31, %s32
      %p36 = pneg %p30
      %p37 = scmp.eq.s32.totalorder %s21, 1
      %p38 = por %p36, %p37
      %p39 = scmp.ne.s32.totalorder %s31, %s34
      %p40 = scmp.eq.s32.totalorder %s21, 0
      %p41 = por %p39, %p40
      %p42 = scmp.ne.s32.totalorder %s31, %s34
      %p43 = scmp.eq.s32.totalorder %s26, 1
      %p44 = por %p42, %p43
      %p45 = scmp.ne.s32.totalorder %s34, %s35
      %p46 = scmp.eq.s32.totalorder %s26, 0
      %p47 = por %p45, %p46
      %p48 = scmp.ne.s32.totalorder %s34, %s35
      %p49 = scmp.eq.s32.totalorder %s27, 1
      %p50 = por %p48, %p49
      %p52 = scmp.ne.s32.totalorder %s35, %s51
      %p53 = scmp.eq.s32.totalorder %s27, 0
      %p54 = por %p52, %p53
      %s55 = ssub.s32 %s21, %s28
      %p56 = scmp.eq.s32.totalorder %s55, 0
      %s58 = sadd.s32 %s57, 1
      %s59 = scalar_select %p56, %s57, %s58
      %p62 = pneg %p56
      %p63 = scmp.eq.s32.totalorder %s21, 1
      %p64 = por %p62, %p63
      %p65 = scmp.ne.s32.totalorder %s57, %s60
      %p66 = scmp.eq.s32.totalorder %s21, 0
      %p67 = por %p65, %p66
      %p68 = scmp.ne.s32.totalorder %s57, %s60
      %p69 = scmp.eq.s32.totalorder %s26, 1
      %p70 = por %p68, %p69
      %p71 = scmp.ne.s32.totalorder %s60, %s61
      %p72 = scmp.eq.s32.totalorder %s26, 0
      %p73 = por %p71, %p72
      %p74 = scmp.ne.s32.totalorder %s60, %s61
      %p75 = scmp.eq.s32.totalorder %s27, 1
      %p76 = por %p74, %p75
      %p78 = scmp.ne.s32.totalorder %s61, %s77
      %p79 = scmp.eq.s32.totalorder %s27, 0
      %p80 = por %p78, %p79
      %s82 = sadd.s32 %s81, 1
      %p85 = scmp.eq.s32.totalorder %s21, 1
      %p86 = scmp.ne.s32.totalorder %s81, %s83
      %p87 = scmp.eq.s32.totalorder %s21, 0
      %p88 = por %p86, %p87
      %p89 = scmp.ne.s32.totalorder %s81, %s83
      %p90 = scmp.eq.s32.totalorder %s26, 1
      %p91 = por %p89, %p90
      %p92 = scmp.ne.s32.totalorder %s83, %s84
      %p93 = scmp.eq.s32.totalorder %s26, 0
      %p94 = por %p92, %p93
      %p95 = scmp.ne.s32.totalorder %s83, %s84
      %p96 = scmp.eq.s32.totalorder %s27, 1
      %p97 = por %p95, %p96
      %p99 = scmp.ne.s32.totalorder %s84, %s98
      %p100 = scmp.eq.s32.totalorder %s27, 0
      %p101 = por %p99, %p100
      %s103 = sadd.s32 %s102, 1
      %p106 = scmp.eq.s32.totalorder %s21, 1
      %p107 = scmp.ne.s32.totalorder %s102, %s104
      %p108 = scmp.eq.s32.totalorder %s21, 0
      %p109 = por %p107, %p108
      %p110 = scmp.ne.s32.totalorder %s102, %s104
      %p111 = scmp.eq.s32.totalorder %s26, 1
      %p112 = por %p110, %p111
      %p113 = scmp.ne.s32.totalorder %s104, %s105
      %p114 = scmp.eq.s32.totalorder %s26, 0
      %p115 = por %p113, %p114
      %p116 = scmp.ne.s32.totalorder %s104, %s105
      %p117 = scmp.eq.s32.totalorder %s27, 1
      %p118 = por %p116, %p117
      %p120 = scmp.ne.s32.totalorder %s105, %s119
      %p121 = scmp.eq.s32.totalorder %s27, 0
      %p122 = por %p120, %p121
      %s124 = sadd.s32 %s123, 1
      %p127 = scmp.eq.s32.totalorder %s21, 1
      %p128 = scmp.ne.s32.totalorder %s123, %s125
      %p129 = scmp.eq.s32.totalorder %s21, 0
      %p130 = por %p128, %p129
      %p131 = scmp.ne.s32.totalorder %s123, %s125
      %p132 = scmp.eq.s32.totalorder %s26, 1
      %p133 = por %p131, %p132
      %p134 = scmp.ne.s32.totalorder %s125, %s126
      %p135 = scmp.eq.s32.totalorder %s26, 0
      %p136 = por %p134, %p135
      %p137 = scmp.ne.s32.totalorder %s125, %s126
      %p138 = scmp.eq.s32.totalorder %s27, 1
      %p139 = por %p137, %p138
      %p141 = scmp.ne.s32.totalorder %s126, %s140
      %p142 = scmp.eq.s32.totalorder %s27, 0
      %p143 = por %p141, %p142
      %s145 = sadd.s32 %s144, 1
      %p148 = scmp.eq.s32.totalorder %s21, 1
      %p149 = scmp.ne.s32.totalorder %s144, %s146
      %p150 = scmp.eq.s32.totalorder %s21, 0
      %p151 = por %p149, %p150
      %p152 = scmp.ne.s32.totalorder %s144, %s146
      %p153 = scmp.eq.s32.totalorder %s26, 1
      %p154 = por %p152, %p153
      %p155 = scmp.ne.s32.totalorder %s146, %s147
      %p156 = scmp.eq.s32.totalorder %s26, 0
      %p157 = por %p155, %p156
      %p158 = scmp.ne.s32.totalorder %s146, %s147
      %p159 = scmp.eq.s32.totalorder %s27, 1
      %p160 = por %p158, %p159
      %p162 = scmp.ne.s32.totalorder %s147, %s161
      %p163 = scmp.eq.s32.totalorder %s27, 0
      %p164 = por %p162, %p163
      %s166 = sadd.s32 %s165, 1
      %p169 = scmp.eq.s32.totalorder %s21, 1
      %p170 = scmp.ne.s32.totalorder %s165, %s167
      %p171 = scmp.eq.s32.totalorder %s21, 0
      %p172 = por %p170, %p171
      %p173 = scmp.ne.s32.totalorder %s165, %s167
      %p174 = scmp.eq.s32.totalorder %s26, 1
      %p175 = por %p173, %p174
      %p176 = scmp.ne.s32.totalorder %s167, %s168
      %p177 = scmp.eq.s32.totalorder %s26, 0
      %p178 = por %p176, %p177
      %p179 = scmp.ne.s32.totalorder %s167, %s168
      %p180 = scmp.eq.s32.totalorder %s27, 1
      %p181 = por %p179, %p180
      %p183 = scmp.ne.s32.totalorder %s168, %s182
      %p184 = scmp.eq.s32.totalorder %s27, 0
      %p185 = por %p183, %p184
      %s187 = sadd.s32 %s186, 1
      %p190 = scmp.eq.s32.totalorder %s21, 1
      %p191 = scmp.ne.s32.totalorder %s186, %s188
      %p192 = scmp.eq.s32.totalorder %s21, 0
      %p193 = por %p191, %p192
      %p194 = scmp.ne.s32.totalorder %s186, %s188
      %p195 = scmp.eq.s32.totalorder %s26, 1
      %p196 = por %p194, %p195
      %p197 = scmp.ne.s32.totalorder %s188, %s189
      %p198 = scmp.eq.s32.totalorder %s26, 0
      %p199 = por %p197, %p198
      %p200 = scmp.ne.s32.totalorder %s188, %s189
      %p201 = scmp.eq.s32.totalorder %s27, 1
      %p202 = por %p200, %p201
      %p204 = scmp.ne.s32.totalorder %s189, %s203
      %p205 = scmp.eq.s32.totalorder %s27, 0
      %p206 = por %p204, %p205
      %s208 = sadd.s32 %s207, 1
      %p211 = scmp.eq.s32.totalorder %s21, 1
      %p212 = scmp.ne.s32.totalorder %s207, %s209
      %p213 = scmp.eq.s32.totalorder %s21, 0
      %p214 = por %p212, %p213
      %p215 = scmp.ne.s32.totalorder %s207, %s209
      %p216 = scmp.eq.s32.totalorder %s26, 1
      %p217 = por %p215, %p216
      %p218 = scmp.ne.s32.totalorder %s209, %s210
      %p219 = scmp.eq.s32.totalorder %s26, 0
      %p220 = por %p218, %p219
      %p221 = scmp.ne.s32.totalorder %s209, %s210
      %p222 = scmp.eq.s32.totalorder %s27, 1
      %p223 = por %p221, %p222
      %p225 = scmp.ne.s32.totalorder %s210, %s224
      %p226 = scmp.eq.s32.totalorder %s27, 0
      %p227 = por %p225, %p226
      %s228 = ssub.s32 %s21, %s28
      %p229 = scmp.eq.s32.totalorder %s228, 0
      %s231 = sadd.s32 %s230, 1
      %s232 = scalar_select %p229, %s230, %s231
      %p235 = pneg %p229
      %p236 = scmp.eq.s32.totalorder %s21, 1
      %p237 = por %p235, %p236
      %p238 = scmp.ne.s32.totalorder %s230, %s233
      %p239 = scmp.eq.s32.totalorder %s21, 0
      %p240 = por %p238, %p239
      %p241 = scmp.ne.s32.totalorder %s230, %s233
      %p242 = scmp.eq.s32.totalorder %s26, 1
      %p243 = por %p241, %p242
      %p244 = scmp.ne.s32.totalorder %s233, %s234
      %p245 = scmp.eq.s32.totalorder %s26, 0
      %p246 = por %p244, %p245
      %p247 = scmp.ne.s32.totalorder %s233, %s234
      %p248 = scmp.eq.s32.totalorder %s27, 1
      %p249 = por %p247, %p248
      %p251 = scmp.ne.s32.totalorder %s234, %s250
      %p252 = scmp.eq.s32.totalorder %s27, 0
      %p253 = por %p251, %p252
      %p254 = scmp.le.s32.totalorder 1, %s21
      %p255 = scmp.lt.s32.totalorder %s21, 3
      %p256 = pnand %p254, %p255
      %p257 = pneg %p256
      // Predicated region
      $region9: #{tpu_custom_call.1} parent=5 // pred_check
        _
      $region10: #{tpu_custom_call.1} parent=5 // pred_check_branch
        %259 = sbr.rel (%p256) target = $region12
      $region11: #{tpu_custom_call.1} parent=5 // pred_region
        %s260 = ssub.s32 %s21, 1
        // Predicated region
        $region13: #{tpu_custom_call.1} parent=11 // pred_check
          %p261 = pneg %p94
        $region14: #{tpu_custom_call.1} parent=11 // pred_check_branch
          %263 = sbr.rel (%p261) target = $region16
        $region15: #{tpu_custom_call.1} parent=11 // pred_region
          _
        $region16: #{tpu_custom_call.1} parent=11 // pred_fallthru
          _
        // Predicated region
        $region17: #{tpu_custom_call.1} parent=11 // pred_check
          %p264 = pneg %p115
        $region18: #{tpu_custom_call.1} parent=11 // pred_check_branch
          %266 = sbr.rel (%p264) target = $region20
        $region19: #{tpu_custom_call.1} parent=11 // pred_region
          _
        $region20: #{tpu_custom_call.1} parent=11 // pred_fallthru
          _
        // Predicated region
        $region21: #{tpu_custom_call.1} parent=11 // pred_check
          %p267 = pneg %p136
        $region22: #{tpu_custom_call.1} parent=11 // pred_check_branch
          %269 = sbr.rel (%p267) target = $region24
        $region23: #{tpu_custom_call.1} parent=11 // pred_region
          _
        $region24: #{tpu_custom_call.1} parent=11 // pred_fallthru
          _
        // Predicated region
        $region25: #{tpu_custom_call.1} parent=11 // pred_check
          %p270 = pneg %p157
        $region26: #{tpu_custom_call.1} parent=11 // pred_check_branch
          %272 = sbr.rel (%p270) target = $region28
        $region27: #{tpu_custom_call.1} parent=11 // pred_region
          _
        $region28: #{tpu_custom_call.1} parent=11 // pred_fallthru
          _
        // Predicated region
        $region29: #{tpu_custom_call.1} parent=11 // pred_check
          %p273 = pneg %p178
        $region30: #{tpu_custom_call.1} parent=11 // pred_check_branch
          %275 = sbr.rel (%p273) target = $region32
        $region31: #{tpu_custom_call.1} parent=11 // pred_region
          _
        $region32: #{tpu_custom_call.1} parent=11 // pred_fallthru
          _
        // Predicated region
        $region33: #{tpu_custom_call.1} parent=11 // pred_check
          %p276 = pneg %p199
        $region34: #{tpu_custom_call.1} parent=11 // pred_check_branch
          %278 = sbr.rel (%p276) target = $region36
        $region35: #{tpu_custom_call.1} parent=11 // pred_region
          _
        $region36: #{tpu_custom_call.1} parent=11 // pred_fallthru
          _
        // Predicated region
        $region37: #{tpu_custom_call.1} parent=11 // pred_check
          %p279 = pneg %p220
        $region38: #{tpu_custom_call.1} parent=11 // pred_check_branch
          %281 = sbr.rel (%p279) target = $region40
        $region39: #{tpu_custom_call.1} parent=11 // pred_region
          _
        $region40: #{tpu_custom_call.1} parent=11 // pred_fallthru
          _
      $region12: #{tpu_custom_call.1} parent=5 // pred_fallthru
        _
      %p282 = scmp.lt.s32.totalorder %s21, 2
      // Predicated region
      $region41: #{tpu_custom_call.1} parent=5 // pred_check
        %p283 = pneg %p282
      $region42: #{tpu_custom_call.1} parent=5 // pred_check_branch
        %285 = sbr.rel (%p283) target = $region44
      $region43: #{tpu_custom_call.1} parent=5 // pred_region
        // Predicated region
        $region45: #{tpu_custom_call.1} parent=43 // pred_check
          %p286 = pneg %p41
        $region46: #{tpu_custom_call.1} parent=43 // pred_check_branch
          %288 = sbr.rel (%p286) target = $region48
        $region47: #{tpu_custom_call.1} parent=43 // pred_region
          %p289 = scmp.lt.s32.totalorder %s21, 1
          %s290 = scalar_select %p289, %s21, 1
          %s291 = smul.addr %s290, 2
          %s292 = smul.addr %s291, 2
          %s293 = scalar_lea.vmem %s0, %s292
        $region48: #{tpu_custom_call.1} parent=43 // pred_fallthru
          _
        // Predicated region
        $region49: #{tpu_custom_call.1} parent=43 // pred_check
          %p294 = pneg %p67
        $region50: #{tpu_custom_call.1} parent=43 // pred_check_branch
          %296 = sbr.rel (%p294) target = $region52
        $region51: #{tpu_custom_call.1} parent=43 // pred_region
          %s297 = sand.u32 %s57, 1
          %s298 = scalar_lea.sflag [#allocation4], %s297
          %s299 = sand.u32 %s57, 1
          %s300 = smul.addr %s299, 4
          %s301 = scalar_lea.vmem [#allocation3], %s300
          %s303 = ssub.s32 64, 64
          %304 = vsyncadd %s298, %s303
          %s305 = smul.addr %s21, 2
          %s306 = smul.addr %s305, 32
          %s307 = scalar_lea.hbm %s1, %s306
          %s309 = sshll.u32 %s301, 4
          %s310 = int_to_ptr.vmem [resolvable:$true] %s309
          %312 = dma.hbm_to_vmem [thread:$0]  %s307, 64, %s310, %s298
        $region52: #{tpu_custom_call.1} parent=43 // pred_fallthru
          _
      $region44: #{tpu_custom_call.1} parent=5 // pred_fallthru
        _
      %p313 = scmp.le.s32.totalorder 1, %s21
      %p314 = scmp.lt.s32.totalorder %s21, 3
      %p315 = pnand %p313, %p314
      %p316 = pneg %p315
      // Predicated region
      $region53: #{tpu_custom_call.1} parent=5 // pred_check
        _
      $region54: #{tpu_custom_call.1} parent=5 // pred_check_branch
        %318 = sbr.rel (%p315) target = $region56
      $region55: #{tpu_custom_call.1} parent=5 // pred_region
        %s319 = ssub.s32 %s21, 1
        %s320 = sand.u32 %s60, 1
        %s321 = scalar_lea.sflag [#allocation4], %s320
        %s322 = sand.u32 %s60, 1
        %s323 = smul.addr %s322, 4
        %s324 = scalar_lea.vmem [#allocation3], %s323
        // Predicated region
        $region57: #{tpu_custom_call.1} parent=55 // pred_check
          %p325 = pneg %p73
        $region58: #{tpu_custom_call.1} parent=55 // pred_check_branch
          %327 = sbr.rel (%p325) target = $region60
        $region59: #{tpu_custom_call.1} parent=55 // pred_region
          %328 = dma.done %s321, 64
        $region60: #{tpu_custom_call.1} parent=55 // pred_fallthru
          _
        %p329 = scmp.lt.s32.totalorder %s26, 1
        %s330 = scalar_select %p329, %s26, 1
        %s331 = smul.addr %s330, 2
        %s332 = smul.addr %s331, 2
        %s333 = scalar_lea.vmem %s0, %s332
        %p334 = pneg %p47
        %p335 = pneg %p44
        %s336 = sand.u32 %s60, 1
        %s337 = scalar_lea.sflag [#allocation4], %s336
        %s338 = sand.u32 %s60, 1
        %s339 = smul.addr %s338, 4
        %s340 = scalar_lea.vmem [#allocation3], %s339
        %p341 = pneg %p73
        %p342 = pneg %p70
        %p343 = pneg %p94
        %p344 = pneg %p91
        %p345 = pneg %p115
        %p346 = pneg %p112
        %p347 = pneg %p136
        %p348 = pneg %p133
        %p349 = pneg %p157
        %p350 = pneg %p154
        %p351 = pneg %p178
        %p352 = pneg %p175
        %p353 = pneg %p199
        %p354 = pneg %p196
        %p355 = pneg %p220
        %p356 = pneg %p217
        %p357 = pneg %p246
        %p358 = pneg %p243
        %s359 = sand.u32 %s233, 1
        %s360 = scalar_lea.sflag [#allocation5], %s359
        %s361 = sand.u32 %s233, 1
        %s362 = smul.addr %s361, 8
        %s363 = scalar_lea.vmem [#allocation6], %s362
        %p364 = scmp.lt.s32.totalorder %s26, 1
        %s365 = scalar_select %p364, %s26, 1
        %s366 = smul.addr %s365, 2
        %s367 = smul.addr %s366, 2
        %s368 = scalar_lea.vmem %s0, %s367
        %v370 = vld [vmem:[%s368] sm:$0xf]
        %v371 = vunpack.c.l.bf16 %v370
        %v373 = vcombine.high %v371, %v371
        %375 = vst [vmem:[#allocation2] sm:$0xf] %v371
        %376 = vst [vmem:[#allocation2 + $0x8] sm:$0xf] %v373
        %v377 = vld [vmem:[%s324] sm:$0xf]
        %v378 = vunpack.c.l.bf16 %v377
        %v380 = vcombine.low %v378, %v378
        %382 = vst [vmem:[#allocation2] sm:$0xf0] %v380
        %383 = vst [vmem:[#allocation2 + $0x8] sm:$0xf0] %v378
        %v384 = vld [vmem:[#allocation2] sm:$0xff]
        %v385 = vld [vmem:[#allocation2 + $0x8] sm:$0xff]
        %386 = vrot.lane.b32.xlu0 %v384, 17
        %v387 = vpop.permute.xlu0 %386
        %388 = vrot.lane.b32.xlu0 %v385, 17
        %v389 = vpop.permute.xlu0 %388
        %v390 = vlaneseq
        %v391 = vand.u32 %v390, 127
        %vm392 = vcmp.lt.s32.totalorder %v391, 17
        %v393 = vsel %vm392, %v387, %v389
        %v394 = vsel %vm392, %v389, %v387
        %v395 = vld [vmem:[%s2] ss:$8 sm:$0x3]
        %vm396 = vcmp.ne.f32.partialorder %v395, 0.0
        %v397 = vsel %vm396, 1, 0
        %v398 = vlaneseq
        %v399 = vshrl.u32 %v398, 7
        %v400 = vsub.s32 0, %v399
        %v401 = vrot.slane %v397, %v400
        %v402 = vlaneseq
        %v403 = vshrl.u32 %v402, 7
        %v404 = vsub.s32 1, %v403
        %v405 = vrot.slane %v397, %v404
        %vm406 = vcmp.eq.s32.totalorder %v401, 1
        %vm407 = vcmp.eq.s32.totalorder %v405, 1
        %v408 = vsel %vm406, %v394, 0.0
        %v409 = vsel %vm407, %v393, 0.0
        %v410 = vld [vmem:[%s3] sm:$0x3]
        %v411 = vpack.c.bf16 %v408, %v408
        %v412 = vpack.c.bf16 %v409, %v409
        %413 = vrot.lane.b32.xlu0 %v384, 16
        %v414 = vpop.permute.xlu0 %413
        %415 = vrot.lane.b32.xlu0 %v385, 16
        %v416 = vpop.permute.xlu0 %415
        %vm417 = vcmp.lt.s32.totalorder %v391, 16
        %v418 = vsel %vm417, %v414, %v416
        %v419 = vsel %vm417, %v416, %v414
        %s420 = scalar_lea.vmem %s2, 1
        %v421 = vld [vmem:[%s420] ss:$8 sm:$0x3]
        %vm422 = vcmp.ne.f32.partialorder %v421, 0.0
        %v423 = vsel %vm422, 1, 0
        %v424 = vlaneseq
        %v425 = vshrl.u32 %v424, 7
        %v426 = vsub.s32 0, %v425
        %v427 = vrot.slane %v423, %v426
        %v428 = vlaneseq
        %v429 = vshrl.u32 %v428, 7
        %v430 = vsub.s32 1, %v429
        %v431 = vrot.slane %v423, %v430
        %vm432 = vcmp.eq.s32.totalorder %v427, 1
        %vm433 = vcmp.eq.s32.totalorder %v431, 1
        %v434 = vsel %vm432, %v419, 0.0
        %v435 = vsel %vm433, %v418, 0.0
        %s436 = scalar_lea.vmem %s3, 2
        %v437 = vld [vmem:[%s436] sm:$0x3]
        %v438 = vpack.c.bf16 %v434, %v434
        %v439 = vpack.c.bf16 %v435, %v435
        %vm440 = vcmask 64512
        %v442 = vsel %vm440, %v437, 0
        %vm444 = vcmask 1043456
        %v446 = vsel %vm444, %v438, 0
        %v449 = vsel %vm444, %v439, 0
        %451 = vmatprep.subr.bf16.mxu0 %v449
        %452 = vmatpush1.bf16.msra.mxu0 %v446
        %453 = vmatprep.subr.bf16.mxu0 0
        %454 = vmatpush1.bf16.msra.mxu0 0
        %455 = vmatprep.subr.bf16.mxu0 0
        %456 = vmatpush1.bf16.msra.mxu0 0
        %457 = vmatprep.subr.bf16.mxu0 0
        %458 = vmatpush1.bf16.msra.mxu0 0
        %459 = vmatprep.subr.bf16.mxu0 0
        %460 = vmatpush1.bf16.msra.mxu0 0
        %461 = vmatprep.subr.bf16.mxu0 0
        %462 = vmatpush1.bf16.msra.mxu0 0
        %463 = vmatprep.subr.bf16.mxu0 0
        %464 = vmatpush1.bf16.msra.mxu0 0
        %465 = vmatprep.subr.bf16.mxu0 0
        %466 = vmatpush1.bf16.msra.mxu0 0
        %467 = vmatprep.subr.bf16.mxu0 0
        %468 = vmatpush1.bf16.msra.mxu0 0
        %469 = vmatprep.subr.bf16.mxu0 0
        %470 = vmatpush1.bf16.msra.mxu0 0
        %471 = vmatprep.subr.bf16.mxu0 0
        %472 = vmatpush1.bf16.msra.mxu0 0
        %473 = vmatprep.subr.bf16.mxu0 0
        %474 = vmatpush1.bf16.msra.mxu0 0
        %475 = vmatprep.subr.bf16.mxu0 0
        %476 = vmatpush1.bf16.msra.mxu0 0
        %477 = vmatprep.subr.bf16.mxu0 0
        %478 = vmatpush1.bf16.msra.mxu0 0
        %479 = vmatprep.subr.bf16.mxu0 0
        %480 = vmatpush1.bf16.msra.mxu0 0
        %481 = vmatprep.subr.bf16.mxu0 0
        %482 = vmatpush1.bf16.msra.mxu0 0
        %483 = vmatprep.mubr.bf16.mxu0 0
        %484 = vmatmul.mubr.bf16.gmra.mrb[0].mxu0 %v442
        %v485 = vpop.f32.mrb[0].mxu0
        %v486 = vadd.f32 0.0, %v485
        %v487 = vpop.f32.mrb[0].mxu0
        %v488 = vadd.f32 0.0, %v487
        %v489 = vpop.f32.mrb[0].mxu0
        %v490 = vpop.f32.mrb[0].mxu0
        %491 = vdwg.mxu0
        %v493 = vsel %vm440, %v410, 0
        %v496 = vsel %vm444, %v411, 0
        %v499 = vsel %vm444, %v412, 0
        %501 = vmatprep.subr.bf16.mxu0 %v499
        %502 = vmatpush1.bf16.msra.mxu0 %v496
        %503 = vmatprep.subr.bf16.mxu0 0
        %504 = vmatpush1.bf16.msra.mxu0 0
        %505 = vmatprep.subr.bf16.mxu0 0
        %506 = vmatpush1.bf16.msra.mxu0 0
        %507 = vmatprep.subr.bf16.mxu0 0
        %508 = vmatpush1.bf16.msra.mxu0 0
        %509 = vmatprep.subr.bf16.mxu0 0
        %510 = vmatpush1.bf16.msra.mxu0 0
        %511 = vmatprep.subr.bf16.mxu0 0
        %512 = vmatpush1.bf16.msra.mxu0 0
        %513 = vmatprep.subr.bf16.mxu0 0
        %514 = vmatpush1.bf16.msra.mxu0 0
        %515 = vmatprep.subr.bf16.mxu0 0
        %516 = vmatpush1.bf16.msra.mxu0 0
        %517 = vmatprep.subr.bf16.mxu0 0
        %518 = vmatpush1.bf16.msra.mxu0 0
        %519 = vmatprep.subr.bf16.mxu0 0
        %520 = vmatpush1.bf16.msra.mxu0 0
        %521 = vmatprep.subr.bf16.mxu0 0
        %522 = vmatpush1.bf16.msra.mxu0 0
        %523 = vmatprep.subr.bf16.mxu0 0
        %524 = vmatpush1.bf16.msra.mxu0 0
        %525 = vmatprep.subr.bf16.mxu0 0
        %526 = vmatpush1.bf16.msra.mxu0 0
        %527 = vmatprep.subr.bf16.mxu0 0
        %528 = vmatpush1.bf16.msra.mxu0 0
        %529 = vmatprep.subr.bf16.mxu0 0
        %530 = vmatpush1.bf16.msra.mxu0 0
        %531 = vmatprep.subr.bf16.mxu0 0
        %532 = vmatpush1.bf16.msra.mxu0 0
        %533 = vmatprep.mubr.bf16.mxu0 0
        %534 = vmatmul.mubr.bf16.gmra.mrb[0].mxu0 %v493
        %v535 = vpop.f32.mrb[0].mxu0
        %v536 = vadd.f32 %v486, %v535
        %v537 = vpop.f32.mrb[0].mxu0
        %v538 = vadd.f32 %v488, %v537
        %v539 = vpop.f32.mrb[0].mxu0
        %v540 = vpop.f32.mrb[0].mxu0
        %541 = vdwg.mxu0
        %542 = vrot.lane.b32.xlu0 %v384, 15
        %v543 = vpop.permute.xlu0 %542
        %544 = vrot.lane.b32.xlu0 %v385, 15
        %v545 = vpop.permute.xlu0 %544
        %vm546 = vcmp.lt.s32.totalorder %v391, 15
        %v547 = vsel %vm546, %v543, %v545
        %v548 = vsel %vm546, %v545, %v543
        %s549 = scalar_lea.vmem %s2, 2
        %v550 = vld [vmem:[%s549] ss:$8 sm:$0x3]
        %vm551 = vcmp.ne.f32.partialorder %v550, 0.0
        %v552 = vsel %vm551, 1, 0
        %v553 = vlaneseq
        %v554 = vshrl.u32 %v553, 7
        %v555 = vsub.s32 0, %v554
        %v556 = vrot.slane %v552, %v555
        %v557 = vlaneseq
        %v558 = vshrl.u32 %v557, 7
        %v559 = vsub.s32 1, %v558
        %v560 = vrot.slane %v552, %v559
        %vm561 = vcmp.eq.s32.totalorder %v556, 1
        %vm562 = vcmp.eq.s32.totalorder %v560, 1
        %v563 = vsel %vm561, %v548, 0.0
        %v564 = vsel %vm562, %v547, 0.0
        %s565 = scalar_lea.vmem %s3, 4
        %v566 = vld [vmem:[%s565] sm:$0x3]
        %v567 = vpack.c.bf16 %v563, %v563
        %v568 = vpack.c.bf16 %v564, %v564
        %v570 = vsel %vm440, %v566, 0
        %v573 = vsel %vm444, %v567, 0
        %v576 = vsel %vm444, %v568, 0
        %578 = vmatprep.subr.bf16.mxu0 %v576
        %579 = vmatpush1.bf16.msra.mxu0 %v573
        %580 = vmatprep.subr.bf16.mxu0 0
        %581 = vmatpush1.bf16.msra.mxu0 0
        %582 = vmatprep.subr.bf16.mxu0 0
        %583 = vmatpush1.bf16.msra.mxu0 0
        %584 = vmatprep.subr.bf16.mxu0 0
        %585 = vmatpush1.bf16.msra.mxu0 0
        %586 = vmatprep.subr.bf16.mxu0 0
        %587 = vmatpush1.bf16.msra.mxu0 0
        %588 = vmatprep.subr.bf16.mxu0 0
        %589 = vmatpush1.bf16.msra.mxu0 0
        %590 = vmatprep.subr.bf16.mxu0 0
        %591 = vmatpush1.bf16.msra.mxu0 0
        %592 = vmatprep.subr.bf16.mxu0 0
        %593 = vmatpush1.bf16.msra.mxu0 0
        %594 = vmatprep.subr.bf16.mxu0 0
        %595 = vmatpush1.bf16.msra.mxu0 0
        %596 = vmatprep.subr.bf16.mxu0 0
        %597 = vmatpush1.bf16.msra.mxu0 0
        %598 = vmatprep.subr.bf16.mxu0 0
        %599 = vmatpush1.bf16.msra.mxu0 0
        %600 = vmatprep.subr.bf16.mxu0 0
        %601 = vmatpush1.bf16.msra.mxu0 0
        %602 = vmatprep.subr.bf16.mxu0 0
        %603 = vmatpush1.bf16.msra.mxu0 0
        %604 = vmatprep.subr.bf16.mxu0 0
        %605 = vmatpush1.bf16.msra.mxu0 0
        %606 = vmatprep.subr.bf16.mxu0 0
        %607 = vmatpush1.bf16.msra.mxu0 0
        %608 = vmatprep.subr.bf16.mxu0 0
        %609 = vmatpush1.bf16.msra.mxu0 0
        %610 = vmatprep.mubr.bf16.mxu0 0
        %611 = vmatmul.mubr.bf16.gmra.mrb[0].mxu0 %v570
        %v612 = vpop.f32.mrb[0].mxu0
        %v613 = vadd.f32 0.0, %v612
        %v614 = vpop.f32.mrb[0].mxu0
        %v615 = vadd.f32 0.0, %v614
        %v616 = vpop.f32.mrb[0].mxu0
        %v617 = vpop.f32.mrb[0].mxu0
        %618 = vdwg.mxu0
        %v619 = vadd.f32 %v536, %v613
        %v620 = vadd.f32 %v538, %v615
        %621 = vrot.lane.b32.xlu0 %v384, 1
        %v622 = vpop.permute.xlu0 %621
        %623 = vrot.lane.b32.xlu0 %v385, 1
        %v624 = vpop.permute.xlu0 %623
        %vm625 = vcmp.lt.s32.totalorder %v391, 1
        %v626 = vsel %vm625, %v622, %v624
        %v627 = vsel %vm625, %v624, %v622
        %s628 = scalar_lea.vmem %s2, 3
        %v629 = vld [vmem:[%s628] ss:$8 sm:$0x3]
        %vm630 = vcmp.ne.f32.partialorder %v629, 0.0
        %v631 = vsel %vm630, 1, 0
        %v632 = vlaneseq
        %v633 = vshrl.u32 %v632, 7
        %v634 = vsub.s32 0, %v633
        %v635 = vrot.slane %v631, %v634
        %v636 = vlaneseq
        %v637 = vshrl.u32 %v636, 7
        %v638 = vsub.s32 1, %v637
        %v639 = vrot.slane %v631, %v638
        %vm640 = vcmp.eq.s32.totalorder %v635, 1
        %vm641 = vcmp.eq.s32.totalorder %v639, 1
        %v642 = vsel %vm640, %v627, 0.0
        %v643 = vsel %vm641, %v626, 0.0
        %s644 = scalar_lea.vmem %s3, 6
        %v645 = vld [vmem:[%s644] sm:$0x3]
        %v646 = vpack.c.bf16 %v642, %v642
        %v647 = vpack.c.bf16 %v643, %v643
        %v649 = vsel %vm440, %v645, 0
        %v652 = vsel %vm444, %v646, 0
        %v655 = vsel %vm444, %v647, 0
        %657 = vmatprep.subr.bf16.mxu0 %v655
        %658 = vmatpush1.bf16.msra.mxu0 %v652
        %659 = vmatprep.subr.bf16.mxu0 0
        %660 = vmatpush1.bf16.msra.mxu0 0
        %661 = vmatprep.subr.bf16.mxu0 0
        %662 = vmatpush1.bf16.msra.mxu0 0
        %663 = vmatprep.subr.bf16.mxu0 0
        %664 = vmatpush1.bf16.msra.mxu0 0
        %665 = vmatprep.subr.bf16.mxu0 0
        %666 = vmatpush1.bf16.msra.mxu0 0
        %667 = vmatprep.subr.bf16.mxu0 0
        %668 = vmatpush1.bf16.msra.mxu0 0
        %669 = vmatprep.subr.bf16.mxu0 0
        %670 = vmatpush1.bf16.msra.mxu0 0
        %671 = vmatprep.subr.bf16.mxu0 0
        %672 = vmatpush1.bf16.msra.mxu0 0
        %673 = vmatprep.subr.bf16.mxu0 0
        %674 = vmatpush1.bf16.msra.mxu0 0
        %675 = vmatprep.subr.bf16.mxu0 0
        %676 = vmatpush1.bf16.msra.mxu0 0
        %677 = vmatprep.subr.bf16.mxu0 0
        %678 = vmatpush1.bf16.msra.mxu0 0
        %679 = vmatprep.subr.bf16.mxu0 0
        %680 = vmatpush1.bf16.msra.mxu0 0
        %681 = vmatprep.subr.bf16.mxu0 0
        %682 = vmatpush1.bf16.msra.mxu0 0
        %683 = vmatprep.subr.bf16.mxu0 0
        %684 = vmatpush1.bf16.msra.mxu0 0
        %685 = vmatprep.subr.bf16.mxu0 0
        %686 = vmatpush1.bf16.msra.mxu0 0
        %687 = vmatprep.subr.bf16.mxu0 0
        %688 = vmatpush1.bf16.msra.mxu0 0
        %689 = vmatprep.mubr.bf16.mxu0 0
        %690 = vmatmul.mubr.bf16.gmra.mrb[0].mxu0 %v649
        %v691 = vpop.f32.mrb[0].mxu0
        %v692 = vadd.f32 0.0, %v691
        %v693 = vpop.f32.mrb[0].mxu0
        %v694 = vadd.f32 0.0, %v693
        %v695 = vpop.f32.mrb[0].mxu0
        %v696 = vpop.f32.mrb[0].mxu0
        %697 = vdwg.mxu0
        %v698 = vadd.f32 %v619, %v692
        %v699 = vadd.f32 %v620, %v694
        %s700 = scalar_lea.vmem %s3, 8
        %v701 = vld [vmem:[%s700] sm:$0x3]
        %v702 = vpack.c.bf16 %v384, %v384
        %v703 = vpack.c.bf16 %v385, %v385
        %v705 = vsel %vm440, %v701, 0
        %v708 = vsel %vm444, %v702, 0
        %v711 = vsel %vm444, %v703, 0
        %713 = vmatprep.subr.bf16.mxu0 %v711
        %714 = vmatpush1.bf16.msra.mxu0 %v708
        %715 = vmatprep.subr.bf16.mxu0 0
        %716 = vmatpush1.bf16.msra.mxu0 0
        %717 = vmatprep.subr.bf16.mxu0 0
        %718 = vmatpush1.bf16.msra.mxu0 0
        %719 = vmatprep.subr.bf16.mxu0 0
        %720 = vmatpush1.bf16.msra.mxu0 0
        %721 = vmatprep.subr.bf16.mxu0 0
        %722 = vmatpush1.bf16.msra.mxu0 0
        %723 = vmatprep.subr.bf16.mxu0 0
        %724 = vmatpush1.bf16.msra.mxu0 0
        %725 = vmatprep.subr.bf16.mxu0 0
        %726 = vmatpush1.bf16.msra.mxu0 0
        %727 = vmatprep.subr.bf16.mxu0 0
        %728 = vmatpush1.bf16.msra.mxu0 0
        %729 = vmatprep.subr.bf16.mxu0 0
        %730 = vmatpush1.bf16.msra.mxu0 0
        %731 = vmatprep.subr.bf16.mxu0 0
        %732 = vmatpush1.bf16.msra.mxu0 0
        %733 = vmatprep.subr.bf16.mxu0 0
        %734 = vmatpush1.bf16.msra.mxu0 0
        %735 = vmatprep.subr.bf16.mxu0 0
        %736 = vmatpush1.bf16.msra.mxu0 0
        %737 = vmatprep.subr.bf16.mxu0 0
        %738 = vmatpush1.bf16.msra.mxu0 0
        %739 = vmatprep.subr.bf16.mxu0 0
        %740 = vmatpush1.bf16.msra.mxu0 0
        %741 = vmatprep.subr.bf16.mxu0 0
        %742 = vmatpush1.bf16.msra.mxu0 0
        %743 = vmatprep.subr.bf16.mxu0 0
        %744 = vmatpush1.bf16.msra.mxu0 0
        %745 = vmatprep.mubr.bf16.mxu0 0
        %746 = vmatmul.mubr.bf16.gmra.mrb[0].mxu0 %v705
        %v747 = vpop.f32.mrb[0].mxu0
        %v748 = vadd.f32 0.0, %v747
        %v749 = vpop.f32.mrb[0].mxu0
        %v750 = vadd.f32 0.0, %v749
        %v751 = vpop.f32.mrb[0].mxu0
        %v752 = vpop.f32.mrb[0].mxu0
        %753 = vdwg.mxu0
        %v754 = vadd.f32 %v698, %v748
        %v755 = vadd.f32 %v699, %v750
        %756 = vrot.lane.b32.xlu0 %v384, 127
        %v757 = vpop.permute.xlu0 %756
        %758 = vrot.lane.b32.xlu0 %v385, 127
        %v759 = vpop.permute.xlu0 %758
        %vm760 = vcmp.lt.s32.totalorder %v391, 127
        %v761 = vsel %vm760, %v757, %v759
        %v762 = vsel %vm760, %v759, %v757
        %s763 = scalar_lea.vmem %s2, 5
        %v764 = vld [vmem:[%s763] ss:$8 sm:$0x3]
        %vm765 = vcmp.ne.f32.partialorder %v764, 0.0
        %v766 = vsel %vm765, 1, 0
        %v767 = vlaneseq
        %v768 = vshrl.u32 %v767, 7
        %v769 = vsub.s32 0, %v768
        %v770 = vrot.slane %v766, %v769
        %v771 = vlaneseq
        %v772 = vshrl.u32 %v771, 7
        %v773 = vsub.s32 1, %v772
        %v774 = vrot.slane %v766, %v773
        %vm775 = vcmp.eq.s32.totalorder %v770, 1
        %vm776 = vcmp.eq.s32.totalorder %v774, 1
        %v777 = vsel %vm775, %v761, 0.0
        %v778 = vsel %vm776, %v762, 0.0
        %s779 = scalar_lea.vmem %s3, 10
        %v780 = vld [vmem:[%s779] sm:$0x3]
        %v781 = vpack.c.bf16 %v777, %v777
        %v782 = vpack.c.bf16 %v778, %v778
        %v784 = vsel %vm440, %v780, 0
        %v787 = vsel %vm444, %v781, 0
        %v790 = vsel %vm444, %v782, 0
        %792 = vmatprep.subr.bf16.mxu0 %v790
        %793 = vmatpush1.bf16.msra.mxu0 %v787
        %794 = vmatprep.subr.bf16.mxu0 0
        %795 = vmatpush1.bf16.msra.mxu0 0
        %796 = vmatprep.subr.bf16.mxu0 0
        %797 = vmatpush1.bf16.msra.mxu0 0
        %798 = vmatprep.subr.bf16.mxu0 0
        %799 = vmatpush1.bf16.msra.mxu0 0
        %800 = vmatprep.subr.bf16.mxu0 0
        %801 = vmatpush1.bf16.msra.mxu0 0
        %802 = vmatprep.subr.bf16.mxu0 0
        %803 = vmatpush1.bf16.msra.mxu0 0
        %804 = vmatprep.subr.bf16.mxu0 0
        %805 = vmatpush1.bf16.msra.mxu0 0
        %806 = vmatprep.subr.bf16.mxu0 0
        %807 = vmatpush1.bf16.msra.mxu0 0
        %808 = vmatprep.subr.bf16.mxu0 0
        %809 = vmatpush1.bf16.msra.mxu0 0
        %810 = vmatprep.subr.bf16.mxu0 0
        %811 = vmatpush1.bf16.msra.mxu0 0
        %812 = vmatprep.subr.bf16.mxu0 0
        %813 = vmatpush1.bf16.msra.mxu0 0
        %814 = vmatprep.subr.bf16.mxu0 0
        %815 = vmatpush1.bf16.msra.mxu0 0
        %816 = vmatprep.subr.bf16.mxu0 0
        %817 = vmatpush1.bf16.msra.mxu0 0
        %818 = vmatprep.subr.bf16.mxu0 0
        %819 = vmatpush1.bf16.msra.mxu0 0
        %820 = vmatprep.subr.bf16.mxu0 0
        %821 = vmatpush1.bf16.msra.mxu0 0
        %822 = vmatprep.subr.bf16.mxu0 0
        %823 = vmatpush1.bf16.msra.mxu0 0
        %824 = vmatprep.mubr.bf16.mxu0 0
        %825 = vmatmul.mubr.bf16.gmra.mrb[0].mxu0 %v784
        %v826 = vpop.f32.mrb[0].mxu0
        %v827 = vadd.f32 0.0, %v826
        %v828 = vpop.f32.mrb[0].mxu0
        %v829 = vadd.f32 0.0, %v828
        %v830 = vpop.f32.mrb[0].mxu0
        %v831 = vpop.f32.mrb[0].mxu0
        %832 = vdwg.mxu0
        %v833 = vadd.f32 %v754, %v827
        %v834 = vadd.f32 %v755, %v829
        %835 = vrot.lane.b32.xlu0 %v384, 113
        %v836 = vpop.permute.xlu0 %835
        %837 = vrot.lane.b32.xlu0 %v385, 113
        %v838 = vpop.permute.xlu0 %837
        %vm839 = vcmp.lt.s32.totalorder %v391, 113
        %v840 = vsel %vm839, %v836, %v838
        %v841 = vsel %vm839, %v838, %v836
        %s842 = scalar_lea.vmem %s2, 6
        %v843 = vld [vmem:[%s842] ss:$8 sm:$0x3]
        %vm844 = vcmp.ne.f32.partialorder %v843, 0.0
        %v845 = vsel %vm844, 1, 0
        %v846 = vlaneseq
        %v847 = vshrl.u32 %v846, 7
        %v848 = vsub.s32 0, %v847
        %v849 = vrot.slane %v845, %v848
        %v850 = vlaneseq
        %v851 = vshrl.u32 %v850, 7
        %v852 = vsub.s32 1, %v851
        %v853 = vrot.slane %v845, %v852
        %vm854 = vcmp.eq.s32.totalorder %v849, 1
        %vm855 = vcmp.eq.s32.totalorder %v853, 1
        %v856 = vsel %vm854, %v840, 0.0
        %v857 = vsel %vm855, %v841, 0.0
        %s858 = scalar_lea.vmem %s3, 12
        %v859 = vld [vmem:[%s858] sm:$0x3]
        %v860 = vpack.c.bf16 %v856, %v856
        %v861 = vpack.c.bf16 %v857, %v857
        %v863 = vsel %vm440, %v859, 0
        %v866 = vsel %vm444, %v860, 0
        %v869 = vsel %vm444, %v861, 0
        %871 = vmatprep.subr.bf16.mxu0 %v869
        %872 = vmatpush1.bf16.msra.mxu0 %v866
        %873 = vmatprep.subr.bf16.mxu0 0
        %874 = vmatpush1.bf16.msra.mxu0 0
        %875 = vmatprep.subr.bf16.mxu0 0
        %876 = vmatpush1.bf16.msra.mxu0 0
        %877 = vmatprep.subr.bf16.mxu0 0
        %878 = vmatpush1.bf16.msra.mxu0 0
        %879 = vmatprep.subr.bf16.mxu0 0
        %880 = vmatpush1.bf16.msra.mxu0 0
        %881 = vmatprep.subr.bf16.mxu0 0
        %882 = vmatpush1.bf16.msra.mxu0 0
        %883 = vmatprep.subr.bf16.mxu0 0
        %884 = vmatpush1.bf16.msra.mxu0 0
        %885 = vmatprep.subr.bf16.mxu0 0
        %886 = vmatpush1.bf16.msra.mxu0 0
        %887 = vmatprep.subr.bf16.mxu0 0
        %888 = vmatpush1.bf16.msra.mxu0 0
        %889 = vmatprep.subr.bf16.mxu0 0
        %890 = vmatpush1.bf16.msra.mxu0 0
        %891 = vmatprep.subr.bf16.mxu0 0
        %892 = vmatpush1.bf16.msra.mxu0 0
        %893 = vmatprep.subr.bf16.mxu0 0
        %894 = vmatpush1.bf16.msra.mxu0 0
        %895 = vmatprep.subr.bf16.mxu0 0
        %896 = vmatpush1.bf16.msra.mxu0 0
        %897 = vmatprep.subr.bf16.mxu0 0
        %898 = vmatpush1.bf16.msra.mxu0 0
        %899 = vmatprep.subr.bf16.mxu0 0
        %900 = vmatpush1.bf16.msra.mxu0 0
        %901 = vmatprep.subr.bf16.mxu0 0
        %902 = vmatpush1.bf16.msra.mxu0 0
        %903 = vmatprep.mubr.bf16.mxu0 0
        %904 = vmatmul.mubr.bf16.gmra.mrb[0].mxu0 %v863
        %v905 = vpop.f32.mrb[0].mxu0
        %v906 = vadd.f32 0.0, %v905
        %v907 = vpop.f32.mrb[0].mxu0
        %v908 = vadd.f32 0.0, %v907
        %v909 = vpop.f32.mrb[0].mxu0
        %v910 = vpop.f32.mrb[0].mxu0
        %911 = vdwg.mxu0
        %v912 = vadd.f32 %v833, %v906
        %v913 = vadd.f32 %v834, %v908
        %914 = vrot.lane.b32.xlu0 %v384, 112
        %v915 = vpop.permute.xlu0 %914
        %916 = vrot.lane.b32.xlu0 %v385, 112
        %v917 = vpop.permute.xlu0 %916
        %vm918 = vcmp.lt.s32.totalorder %v391, 112
        %v919 = vsel %vm918, %v915, %v917
        %v920 = vsel %vm918, %v917, %v915
        %s921 = scalar_lea.vmem %s2, 7
        %v922 = vld [vmem:[%s921] ss:$8 sm:$0x3]
        %vm923 = vcmp.ne.f32.partialorder %v922, 0.0
        %v924 = vsel %vm923, 1, 0
        %v925 = vlaneseq
        %v926 = vshrl.u32 %v925, 7
        %v927 = vsub.s32 0, %v926
        %v928 = vrot.slane %v924, %v927
        %v929 = vlaneseq
        %v930 = vshrl.u32 %v929, 7
        %v931 = vsub.s32 1, %v930
        %v932 = vrot.slane %v924, %v931
        %vm933 = vcmp.eq.s32.totalorder %v928, 1
        %vm934 = vcmp.eq.s32.totalorder %v932, 1
        %v935 = vsel %vm933, %v919, 0.0
        %v936 = vsel %vm934, %v920, 0.0
        %s937 = scalar_lea.vmem %s3, 14
        %v938 = vld [vmem:[%s937] sm:$0x3]
        %v939 = vpack.c.bf16 %v935, %v935
        %v940 = vpack.c.bf16 %v936, %v936
        %v942 = vsel %vm440, %v938, 0
        %v945 = vsel %vm444, %v939, 0
        %v948 = vsel %vm444, %v940, 0
        %950 = vmatprep.subr.bf16.mxu0 %v948
        %951 = vmatpush1.bf16.msra.mxu0 %v945
        %952 = vmatprep.subr.bf16.mxu0 0
        %953 = vmatpush1.bf16.msra.mxu0 0
        %954 = vmatprep.subr.bf16.mxu0 0
        %955 = vmatpush1.bf16.msra.mxu0 0
        %956 = vmatprep.subr.bf16.mxu0 0
        %957 = vmatpush1.bf16.msra.mxu0 0
        %958 = vmatprep.subr.bf16.mxu0 0
        %959 = vmatpush1.bf16.msra.mxu0 0
        %960 = vmatprep.subr.bf16.mxu0 0
        %961 = vmatpush1.bf16.msra.mxu0 0
        %962 = vmatprep.subr.bf16.mxu0 0
        %963 = vmatpush1.bf16.msra.mxu0 0
        %964 = vmatprep.subr.bf16.mxu0 0
        %965 = vmatpush1.bf16.msra.mxu0 0
        %966 = vmatprep.subr.bf16.mxu0 0
        %967 = vmatpush1.bf16.msra.mxu0 0
        %968 = vmatprep.subr.bf16.mxu0 0
        %969 = vmatpush1.bf16.msra.mxu0 0
        %970 = vmatprep.subr.bf16.mxu0 0
        %971 = vmatpush1.bf16.msra.mxu0 0
        %972 = vmatprep.subr.bf16.mxu0 0
        %973 = vmatpush1.bf16.msra.mxu0 0
        %974 = vmatprep.subr.bf16.mxu0 0
        %975 = vmatpush1.bf16.msra.mxu0 0
        %976 = vmatprep.subr.bf16.mxu0 0
        %977 = vmatpush1.bf16.msra.mxu0 0
        %978 = vmatprep.subr.bf16.mxu0 0
        %979 = vmatpush1.bf16.msra.mxu0 0
        %980 = vmatprep.subr.bf16.mxu0 0
        %981 = vmatpush1.bf16.msra.mxu0 0
        %982 = vmatprep.mubr.bf16.mxu0 0
        %983 = vmatmul.mubr.bf16.gmra.mrb[0].mxu0 %v942
        %v984 = vpop.f32.mrb[0].mxu0
        %v985 = vadd.f32 0.0, %v984
        %v986 = vpop.f32.mrb[0].mxu0
        %v987 = vadd.f32 0.0, %v986
        %v988 = vpop.f32.mrb[0].mxu0
        %v989 = vpop.f32.mrb[0].mxu0
        %990 = vdwg.mxu0
        %v991 = vadd.f32 %v912, %v985
        %v992 = vadd.f32 %v913, %v987
        %993 = vrot.lane.b32.xlu0 %v384, 111
        %v994 = vpop.permute.xlu0 %993
        %995 = vrot.lane.b32.xlu0 %v385, 111
        %v996 = vpop.permute.xlu0 %995
        %vm997 = vcmp.lt.s32.totalorder %v391, 111
        %v998 = vsel %vm997, %v994, %v996
        %v999 = vsel %vm997, %v996, %v994
        %s1000 = scalar_lea.vmem %s2, 16
        %v1001 = vld [vmem:[%s1000] ss:$8 sm:$0x3]
        %vm1002 = vcmp.ne.f32.partialorder %v1001, 0.0
        %v1003 = vsel %vm1002, 1, 0
        %v1004 = vlaneseq
        %v1005 = vshrl.u32 %v1004, 7
        %v1006 = vsub.s32 0, %v1005
        %v1007 = vrot.slane %v1003, %v1006
        %v1008 = vlaneseq
        %v1009 = vshrl.u32 %v1008, 7
        %v1010 = vsub.s32 1, %v1009
        %v1011 = vrot.slane %v1003, %v1010
        %vm1012 = vcmp.eq.s32.totalorder %v1007, 1
        %vm1013 = vcmp.eq.s32.totalorder %v1011, 1
        %v1014 = vsel %vm1012, %v998, 0.0
        %v1015 = vsel %vm1013, %v999, 0.0
        %s1016 = scalar_lea.vmem %s3, 16
        %v1017 = vld [vmem:[%s1016] sm:$0x3]
        %v1018 = vpack.c.bf16 %v1014, %v1014
        %v1019 = vpack.c.bf16 %v1015, %v1015
        %v1021 = vsel %vm440, %v1017, 0
        %v1024 = vsel %vm444, %v1018, 0
        %v1027 = vsel %vm444, %v1019, 0
        %1029 = vmatprep.subr.bf16.mxu0 %v1027
        %1030 = vmatpush1.bf16.msra.mxu0 %v1024
        %1031 = vmatprep.subr.bf16.mxu0 0
        %1032 = vmatpush1.bf16.msra.mxu0 0
        %1033 = vmatprep.subr.bf16.mxu0 0
        %1034 = vmatpush1.bf16.msra.mxu0 0
        %1035 = vmatprep.subr.bf16.mxu0 0
        %1036 = vmatpush1.bf16.msra.mxu0 0
        %1037 = vmatprep.subr.bf16.mxu0 0
        %1038 = vmatpush1.bf16.msra.mxu0 0
        %1039 = vmatprep.subr.bf16.mxu0 0
        %1040 = vmatpush1.bf16.msra.mxu0 0
        %1041 = vmatprep.subr.bf16.mxu0 0
        %1042 = vmatpush1.bf16.msra.mxu0 0
        %1043 = vmatprep.subr.bf16.mxu0 0
        %1044 = vmatpush1.bf16.msra.mxu0 0
        %1045 = vmatprep.subr.bf16.mxu0 0
        %1046 = vmatpush1.bf16.msra.mxu0 0
        %1047 = vmatprep.subr.bf16.mxu0 0
        %1048 = vmatpush1.bf16.msra.mxu0 0
        %1049 = vmatprep.subr.bf16.mxu0 0
        %1050 = vmatpush1.bf16.msra.mxu0 0
        %1051 = vmatprep.subr.bf16.mxu0 0
        %1052 = vmatpush1.bf16.msra.mxu0 0
        %1053 = vmatprep.subr.bf16.mxu0 0
        %1054 = vmatpush1.bf16.msra.mxu0 0
        %1055 = vmatprep.subr.bf16.mxu0 0
        %1056 = vmatpush1.bf16.msra.mxu0 0
        %1057 = vmatprep.subr.bf16.mxu0 0
        %1058 = vmatpush1.bf16.msra.mxu0 0
        %1059 = vmatprep.subr.bf16.mxu0 0
        %1060 = vmatpush1.bf16.msra.mxu0 0
        %1061 = vmatprep.mubr.bf16.mxu0 0
        %1062 = vmatmul.mubr.bf16.gmra.mrb[0].mxu0 %v1021
        %v1063 = vpop.f32.mrb[0].mxu0
        %v1064 = vadd.f32 0.0, %v1063
        %v1065 = vpop.f32.mrb[0].mxu0
        %v1066 = vadd.f32 0.0, %v1065
        %v1067 = vpop.f32.mrb[0].mxu0
        %v1068 = vpop.f32.mrb[0].mxu0
        %1069 = vdwg.mxu0
        %v1070 = vadd.f32 %v991, %v1064
        %v1071 = vadd.f32 %v992, %v1066
        %v1072 = vld [vmem:[%s4] sm:$0xf]
        %1074 = vset.pattern.permute.xlu0 0
        %1075 = vperm.xlu0 %1074, %v1072
        %v1076 = vpop.permute.xlu0 %1075
        %v1078 = vadd.f32 %v1070, %v1076
        %v1079 = vadd.f32 %v1071, %v1076
        %v1080 = vmax.f32 %v1078, 0.0
        %v1081 = vmax.f32 %v1079, 0.0
        %v1082 = vsel %vm444, %v1080, 0.0
        %v1083 = vsel %vm444, %v1081, 0.0
        %v1084 = vadd.f32 %v1082, %v1083
        %1085 = vadd.xlane.f32.xlu0 %v1084
        %v1086 = vpop.xlane.xlu0 %1085
        %v1087 = vld [vmem:[%s5] sm:$0xf]
        %v1088 = vld [vmem:[%s6] sm:$0xf]
        %vm1089 = vcmask 31744
        %v1091 = vsel %vm1089, %v1087, 0
        %v1094 = vsel %vm444, %v1086, 0
        %1096 = vmatprep.subr.mxu0 0.0
        %1097 = vmatpush1.msra.mxu0 %v1094
        %1098 = vmatprep.subr.mxu0 0.0
        %1099 = vmatpush1.msra.mxu0 0.0
        %1100 = vmatprep.subr.mxu0 0.0
        %1101 = vmatpush1.msra.mxu0 0.0
        %1102 = vmatprep.subr.mxu0 0.0
        %1103 = vmatpush1.msra.mxu0 0.0
        %1104 = vmatprep.subr.mxu0 0.0
        %1105 = vmatpush1.msra.mxu0 0.0
        %1106 = vmatprep.subr.mxu0 0.0
        %1107 = vmatpush1.msra.mxu0 0.0
        %1108 = vmatprep.subr.mxu0 0.0
        %1109 = vmatpush1.msra.mxu0 0.0
        %1110 = vmatprep.subr.mxu0 0.0
        %1111 = vmatpush1.msra.mxu0 0.0
        %1112 = vmatprep.subr.mxu0 0.0
        %1113 = vmatpush1.msra.mxu0 0.0
        %1114 = vmatprep.subr.mxu0 0.0
        %1115 = vmatpush1.msra.mxu0 0.0
        %1116 = vmatprep.subr.mxu0 0.0
        %1117 = vmatpush1.msra.mxu0 0.0
        %1118 = vmatprep.subr.mxu0 0.0
        %1119 = vmatpush1.msra.mxu0 0.0
        %1120 = vmatprep.subr.mxu0 0.0
        %1121 = vmatpush1.msra.mxu0 0.0
        %1122 = vmatprep.subr.mxu0 0.0
        %1123 = vmatpush1.msra.mxu0 0.0
        %1124 = vmatprep.subr.mxu0 0.0
        %1125 = vmatpush1.msra.mxu0 0.0
        %1126 = vmatprep.subr.mxu0 0.0
        %1127 = vmatpush1.msra.mxu0 0.0
        %1128 = vmatprep.subr.mxu0 0.0
        %1129 = vmatpush1.msra.mxu0 0.0
        %1130 = vmatprep.subr.mxu0 0.0
        %1131 = vmatpush1.msra.mxu0 0.0
        %1132 = vmatprep.subr.mxu0 0.0
        %1133 = vmatpush1.msra.mxu0 0.0
        %1134 = vmatprep.subr.mxu0 0.0
        %1135 = vmatpush1.msra.mxu0 0.0
        %1136 = vmatprep.subr.mxu0 0.0
        %1137 = vmatpush1.msra.mxu0 0.0
        %1138 = vmatprep.subr.mxu0 0.0
        %1139 = vmatpush1.msra.mxu0 0.0
        %1140 = vmatprep.subr.mxu0 0.0
        %1141 = vmatpush1.msra.mxu0 0.0
        %1142 = vmatprep.subr.mxu0 0.0
        %1143 = vmatpush1.msra.mxu0 0.0
        %1144 = vmatprep.subr.mxu0 0.0
        %1145 = vmatpush1.msra.mxu0 0.0
        %1146 = vmatprep.subr.mxu0 0.0
        %1147 = vmatpush1.msra.mxu0 0.0
        %1148 = vmatprep.subr.mxu0 0.0
        %1149 = vmatpush1.msra.mxu0 0.0
        %1150 = vmatprep.subr.mxu0 0.0
        %1151 = vmatpush1.msra.mxu0 0.0
        %1152 = vmatprep.subr.mxu0 0.0
        %1153 = vmatpush1.msra.mxu0 0.0
        %1154 = vmatprep.subr.mxu0 0.0
        %1155 = vmatpush1.msra.mxu0 0.0
        %1156 = vmatprep.subr.mxu0 0.0
        %1157 = vmatpush1.msra.mxu0 0.0
        %1158 = vmatprep.subr.mxu0 0.0
        %1159 = vmatpush1.msra.mxu0 0.0
        %1160 = vmatprep.mubr.f32.mxu0 0.0
        %1161 = vmatmul.mubr.f32.gmra.mrb[0].mxu0 %v1091
        %v1162 = vpop.f32.mrb[0].mxu0
        %v1163 = vadd.f32 %v1088, %v1162
        %v1164 = vpop.f32.mrb[0].mxu0
        %1165 = vdwg.mxu0
        %v1166 = vmax.f32 %v1163, 0.0
        %v1167 = vld [vmem:[%s7] sm:$0xf]
        %v1168 = vld [vmem:[%s8] sm:$0xf]
        %v1170 = vsel %vm1089, %v1167, 0
        %v1173 = vsel %vm444, %v1166, 0
        %1175 = vmatprep.subr.mxu0 0.0
        %1176 = vmatpush1.msra.mxu0 %v1173
        %1177 = vmatprep.subr.mxu0 0.0
        %1178 = vmatpush1.msra.mxu0 0.0
        %1179 = vmatprep.subr.mxu0 0.0
        %1180 = vmatpush1.msra.mxu0 0.0
        %1181 = vmatprep.subr.mxu0 0.0
        %1182 = vmatpush1.msra.mxu0 0.0
        %1183 = vmatprep.subr.mxu0 0.0
        %1184 = vmatpush1.msra.mxu0 0.0
        %1185 = vmatprep.subr.mxu0 0.0
        %1186 = vmatpush1.msra.mxu0 0.0
        %1187 = vmatprep.subr.mxu0 0.0
        %1188 = vmatpush1.msra.mxu0 0.0
        %1189 = vmatprep.subr.mxu0 0.0
        %1190 = vmatpush1.msra.mxu0 0.0
        %1191 = vmatprep.subr.mxu0 0.0
        %1192 = vmatpush1.msra.mxu0 0.0
        %1193 = vmatprep.subr.mxu0 0.0
        %1194 = vmatpush1.msra.mxu0 0.0
        %1195 = vmatprep.subr.mxu0 0.0
        %1196 = vmatpush1.msra.mxu0 0.0
        %1197 = vmatprep.subr.mxu0 0.0
        %1198 = vmatpush1.msra.mxu0 0.0
        %1199 = vmatprep.subr.mxu0 0.0
        %1200 = vmatpush1.msra.mxu0 0.0
        %1201 = vmatprep.subr.mxu0 0.0
        %1202 = vmatpush1.msra.mxu0 0.0
        %1203 = vmatprep.subr.mxu0 0.0
        %1204 = vmatpush1.msra.mxu0 0.0
        %1205 = vmatprep.subr.mxu0 0.0
        %1206 = vmatpush1.msra.mxu0 0.0
        %1207 = vmatprep.subr.mxu0 0.0
        %1208 = vmatpush1.msra.mxu0 0.0
        %1209 = vmatprep.subr.mxu0 0.0
        %1210 = vmatpush1.msra.mxu0 0.0
        %1211 = vmatprep.subr.mxu0 0.0
        %1212 = vmatpush1.msra.mxu0 0.0
        %1213 = vmatprep.subr.mxu0 0.0
        %1214 = vmatpush1.msra.mxu0 0.0
        %1215 = vmatprep.subr.mxu0 0.0
        %1216 = vmatpush1.msra.mxu0 0.0
        %1217 = vmatprep.subr.mxu0 0.0
        %1218 = vmatpush1.msra.mxu0 0.0
        %1219 = vmatprep.subr.mxu0 0.0
        %1220 = vmatpush1.msra.mxu0 0.0
        %1221 = vmatprep.subr.mxu0 0.0
        %1222 = vmatpush1.msra.mxu0 0.0
        %1223 = vmatprep.subr.mxu0 0.0
        %1224 = vmatpush1.msra.mxu0 0.0
        %1225 = vmatprep.subr.mxu0 0.0
        %1226 = vmatpush1.msra.mxu0 0.0
        %1227 = vmatprep.subr.mxu0 0.0
        %1228 = vmatpush1.msra.mxu0 0.0
        %1229 = vmatprep.subr.mxu0 0.0
        %1230 = vmatpush1.msra.mxu0 0.0
        %1231 = vmatprep.subr.mxu0 0.0
        %1232 = vmatpush1.msra.mxu0 0.0
        %1233 = vmatprep.subr.mxu0 0.0
        %1234 = vmatpush1.msra.mxu0 0.0
        %1235 = vmatprep.subr.mxu0 0.0
        %1236 = vmatpush1.msra.mxu0 0.0
        %1237 = vmatprep.subr.mxu0 0.0
        %1238 = vmatpush1.msra.mxu0 0.0
        %1239 = vmatprep.mubr.f32.mxu0 0.0
        %1240 = vmatmul.mubr.f32.gmra.mrb[0].mxu0 %v1170
        %v1241 = vpop.f32.mrb[0].mxu0
        %v1242 = vadd.f32 %v1168, %v1241
        %v1243 = vpop.f32.mrb[0].mxu0
        %1244 = vdwg.mxu0
        %v1245 = vxor.u32 %v1242, 2147483648
        %v1246 = vmul.f32 %v1245, 1.442695
        %v1247 = vpow.pop %v1246
        %v1248 = vadd.f32 %v1247, 1.0
        %v1249 = vrcp.pop %v1248
        %v1250 = vmul.f32 1.0, %v1249
        %v1251 = vadd.f32 %v1250, 1.0
        %1253 = vset.pattern.permute.xlu0 0
        %1254 = vperm.xlu0 %1253, %v1251
        %v1255 = vpop.permute.xlu0 %1254
        %v1257 = vmul.f32 %v1080, %v1255
        %v1258 = vmul.f32 %v1081, %v1255
        %v1261 = vcombine.low %v1257, %v1258
        %1263 = vst [vmem:[%s363] sm:$0xff] %v1261
        %s1264 = sand.u32 %s233, 1
        %s1265 = scalar_lea.sflag [#allocation5], %s1264
        %s1266 = sand.u32 %s233, 1
        %s1267 = smul.addr %s1266, 8
        %s1268 = scalar_lea.vmem [#allocation6], %s1267
        // Predicated region
        $region61: #{tpu_custom_call.1} parent=55 // pred_check
          %p1269 = pneg %p243
        $region62: #{tpu_custom_call.1} parent=55 // pred_check_branch
          %1271 = sbr.rel (%p1269) target = $region64
        $region63: #{tpu_custom_call.1} parent=55 // pred_region
          %s1273 = ssub.s32 128, 128
          %1274 = vsyncadd %s1265, %s1273
          %s1275 = smul.addr %s26, 2
          %s1276 = smul.addr %s1275, 64
          %s1277 = scalar_lea.hbm %s9, %s1276
          %s1279 = sshll.u32 %s1268, 4
          %s1280 = int_to_ptr.vmem [resolvable:$true] %s1279
          %1282 = dma.vmem_to_hbm [thread:$0]  %s1280, 128, %s1277, %s1265
        $region64: #{tpu_custom_call.1} parent=55 // pred_fallthru
          _
      $region56: #{tpu_custom_call.1} parent=5 // pred_fallthru
        _
      %p1283 = scmp.le.s32.totalorder 2, %s21
      // Predicated region
      $region65: #{tpu_custom_call.1} parent=5 // pred_check
        %p1284 = pneg %p1283
      $region66: #{tpu_custom_call.1} parent=5 // pred_check_branch
        %1286 = sbr.rel (%p1284) target = $region68
      $region67: #{tpu_custom_call.1} parent=5 // pred_region
        %s1287 = ssub.s32 %s21, 2
        // Predicated region
        $region69: #{tpu_custom_call.1} parent=67 // pred_check
          %p1288 = pneg %p249
        $region70: #{tpu_custom_call.1} parent=67 // pred_check_branch
          %1290 = sbr.rel (%p1288) target = $region72
        $region71: #{tpu_custom_call.1} parent=67 // pred_region
          %s1291 = sand.u32 %s234, 1
          %s1292 = scalar_lea.sflag [#allocation5], %s1291
          %s1293 = sand.u32 %s234, 1
          %s1294 = smul.addr %s1293, 8
          %s1295 = scalar_lea.vmem [#allocation6], %s1294
          %1296 = dma.done %s1292, 128
        $region72: #{tpu_custom_call.1} parent=67 // pred_fallthru
          _
      $region68: #{tpu_custom_call.1} parent=5 // pred_fallthru
        _
    $region6: #{tpu_custom_call.1} parent=1 // loop_footer
      %s25 = sadd.s32 1, %s21
    $region7: #{tpu_custom_call.1} parent=1 // loop_footer_branch
      %20 = sbr.rel target = $region3
    $region8: #{tpu_custom_call.1} parent=1 // loop_exit
      _
    %1297 = vsyncpa [#allocation4], 1
    %s1298 = scalar_lea.sflag [#allocation4], 1
    %1299 = vsyncpa %s1298, 1
    %1300 = vsyncpa [#allocation5], 1
    %s1301 = scalar_lea.sflag [#allocation5], 1
    %1302 = vsyncpa %s1301, 1

</llo_original>
